<compile_context>
chip_gen: v5e
topology: v5e:2x2
jax: 0.10.0
libtpu: 0.0.40
codegen_flags: <defaults>
</compile_context>

<pallas_src>
import jax
import jax.numpy as jnp
from jax.experimental import pallas as pl
from jax.experimental.pallas import tpu as pltpu

EPS = 1e-5                      # nn.LayerNorm default
_INV_SQRT2 = 0.7071067811865476


def _layernorm_fp32(x_f32, gamma_f32, beta_f32):
    # Single-pass mean/variance (one cross-lane reduction pass, fewer fp32 temps).
    mean = jnp.mean(x_f32, axis=-1, keepdims=True)
    mean_sq = jnp.mean(x_f32 * x_f32, axis=-1, keepdims=True)
    var = jnp.maximum(mean_sq - mean * mean, 0.0)
    return (x_f32 - mean) * jax.lax.rsqrt(var + EPS) * gamma_f32 + beta_f32


def wan_image_embedding_kernel(
    x_ref,     # (TM, Din)      input rows, native dtype (bf16/fp32)
    pin_ref,   # (3, Din)       fp32 rows: [norm1.gamma, norm1.beta, ff.proj.bias]
    w1_ref,    # (Din, Dinner)  bf16 ff.net[0].proj weight (VMEM-resident)
    w2_ref,    # (Dinner, Dout) bf16 ff.net[2] weight (VMEM-resident)
    pout_ref,  # (3, Dout)      fp32 rows: [ff.net[2].bias, norm2.gamma, norm2.beta]
    o_ref,     # (TM, Dout)     bf16 output
):
    g1 = pin_ref[0:1, :]
    b1 = pin_ref[1:2, :]
    bb1 = pin_ref[2:3, :]
    bb2 = pout_ref[0:1, :]
    g2 = pout_ref[1:2, :]
    b2 = pout_ref[2:3, :]

    # ---- FP32LayerNorm #1 (upcast native-dtype input inside the kernel) ----
    x = x_ref[...].astype(jnp.float32)
    h = _layernorm_fp32(x, g1, b1)

    # ---- autocast(bf16) Linear #1: bf16 MXU matmul, fp32 accumulation,
    #      bias added to the fp32 accumulator, single bf16 quantization point.
    h16 = h.astype(jnp.bfloat16)
    acc1 = jnp.dot(h16, w1_ref[...], preferred_element_type=jnp.float32) + bb1
    y1f = acc1.astype(jnp.bfloat16).astype(jnp.float32)

    # ---- GELU, approximate="none" (exact erf) in fp32 on the bf16-quantized
    #      activation. (On v5e, if the VALU slot binds, swap for tanh-approx GELU.)
    gelu16 = (0.5 * y1f * (1.0 + jax.lax.erf(y1f * _INV_SQRT2))).astype(jnp.bfloat16)

    # ---- autocast(bf16) Linear #2 ----
    acc2 = jnp.dot(gelu16, w2_ref[...], preferred_element_type=jnp.float32) + bb2
    y2f = acc2.astype(jnp.bfloat16).astype(jnp.float32)

    # ---- FP32LayerNorm #2, cast back to bf16 ----
    o_ref[...] = _layernorm_fp32(y2f, g2, b2).astype(o_ref.dtype)


def _round_up(x, m):
    return (x + m - 1) // m * m


def _vmem_estimate(tile, Din, Dinner, Dout, x_bytes):
    return (
        2 * tile * Din * x_bytes                      # double-buffered input tile
        + 2 * tile * Dout * 2                         # double-buffered bf16 output tile
        + (Din * Dinner + Dinner * Dout) * 2          # single-buffered bf16 weights
        + (3 * Din + 3 * Dout) * 4                    # single-buffered fp32 params
        + 4 * tile * (Din + 2 * Dinner + 2 * Dout)    # rough fp32 in-body temporaries
    )


def _vmem_budget():
    # Physical/scoped VMEM ceiling for this generation (v7x: 64 MiB, v5e/v6e: 128 MiB),
    # minus headroom for Mosaic internal scratch.
    try:
        cap = int(getattr(pltpu.get_tpu_info(), "vmem_capacity_bytes", 64 << 20))
    except Exception:
        cap = 64 << 20
    return cap - (4 << 20)


def _pick_tile(requested, rows, Din, Dinner, Dout, x_bytes, budget):
    if requested is None:
        # Larger tile when VMEM comfortably allows it (v5e/v6e), else 256.
        requested = 512 if _vmem_estimate(512, Din, Dinner, Dout, x_bytes) <= budget // 2 else 256
    # Multiple of 16 (bf16 sublane packing of the output tile); cap for tiny inputs.
    tile = max(16, min(_round_up(requested, 16), _round_up(rows, 16)))
    while tile > 16 and _vmem_estimate(tile, Din, Dinner, Dout, x_bytes) > budget:
        tile = max(16, _round_up(tile // 2, 16))
    return tile


def _build_and_call(x2d, pin, w1, w2, pout, *, tile, rows_p, vmem_limit, single_buffer):
    Din, Dinner = w1.shape
    Dout = w2.shape[1]

    def resident(shape):
        # Constant index map -> DMA'd once; Buffered(1) drops the useless second buffer.
        idx = (lambda i: (0, 0))
        if single_buffer:
            return pl.BlockSpec(shape, idx, pipeline_mode=pl.Buffered(1))
        return pl.BlockSpec(shape, idx)

    return pl.pallas_call(
        wan_image_embedding_kernel,
        out_shape=jax.ShapeDtypeStruct((rows_p, Dout), jnp.bfloat16),
        grid=(rows_p // tile,),
        in_specs=[
            pl.BlockSpec((tile, Din), lambda i: (i, 0)),   # x rows (native dtype)
            resident((3, Din)),                            # [g1, b1, bb1] fp32
            resident((Din, Dinner)),                       # W1 (bf16)
            resident((Dinner, Dout)),                      # W2 (bf16)
            resident((3, Dout)),                           # [bb2, g2, b2] fp32
        ],
        out_specs=pl.BlockSpec((tile, Dout), lambda i: (i, 0)),
        compiler_params=pltpu.CompilerParams(
            dimension_semantics=("parallel",),   # v7x: row axis split across both TCs
            vmem_limit_bytes=vmem_limit,
        ),
    )(x2d, pin, w1, w2, pout)


def wan_image_embedding(x, params, *, row_tile=None):
    """x: (B, S, Din), any float dtype. Returns (B, S, Dout) bfloat16."""
    B, S, Din = x.shape
    Dinner = params["w1"].shape[1]
    Dout = params["w2"].shape[1]
    assert params["w1"].shape[0] == Dinner, "FeedForward(mult=1) => inner dim == in_features"
    rows = B * S
    x_bytes = jnp.dtype(x.dtype).itemsize

    budget = _vmem_budget()
    tile = _pick_tile(row_tile, rows, Din, Dinner, Dout, x_bytes, budget)
    rows_p = _round_up(rows, tile)

    # Keep the input in its native dtype (no wrapper fp32 cast); pad only if the
    # row count is ragged. Padded zero rows are independent and sliced off below.
    x2d = x.reshape(rows, Din)
    if rows_p != rows:
        x2d = jnp.pad(x2d, ((0, rows_p - rows), (0, 0)))

    # Pre-cast the big matrices to bf16 once (matches autocast weight casting;
    # halves HBM weight traffic and VMEM weight footprint).
    w1 = params["w1"].astype(jnp.bfloat16)
    w2 = params["w2"].astype(jnp.bfloat16)
    # Fold the six tiny per-channel fp32 vectors into two arrays.
    pin = jnp.concatenate(
        [params["g1"].astype(jnp.float32),
         params["b1"].astype(jnp.float32),
         params["bb1"].astype(jnp.float32)], axis=0)          # (3, Din)
    pout = jnp.concatenate(
        [params["bb2"].astype(jnp.float32),
         params["g2"].astype(jnp.float32),
         params["b2"].astype(jnp.float32)], axis=0)           # (3, Dout)

    est = _vmem_estimate(tile, Din, Dinner, Dout, x_bytes)
    vmem_limit = min(budget, max(32 << 20, int(est * 1.25)))

    try:
        out2d = _build_and_call(x2d, pin, w1, w2, pout, tile=tile, rows_p=rows_p,
                                vmem_limit=vmem_limit, single_buffer=True)
    except Exception:
        # Fallback for JAX builds that reject single-buffered (Buffered(1)) inputs:
        # identical numerics, just the default double-buffering for the weights.
        out2d = _build_and_call(x2d, pin, w1, w2, pout, tile=tile, rows_p=rows_p,
                                vmem_limit=vmem_limit, single_buffer=False)

    return out2d[:rows].reshape(B, S, Dout)


def init_params(key, in_features, out_features):
    # FeedForward(in, out, mult=1, activation_fn='gelu'):
    #   inner = in_features * 1
    #   net[0] = GELU(Linear(in, inner)); net[2] = Linear(inner, out)
    inner = in_features * 1
    k1, k2, k3, k4 = jax.random.split(key, 4)
    s1 = 1.0 / jnp.sqrt(in_features)
    s2 = 1.0 / jnp.sqrt(inner)
    return {
        # LayerNorm affine params (fp32)
        "g1": jnp.ones((1, in_features), jnp.float32),
        "b1": jnp.zeros((1, in_features), jnp.float32),
        "g2": jnp.ones((1, out_features), jnp.float32),
        "b2": jnp.zeros((1, out_features), jnp.float32),
        # Linear weights stored transposed (in, out) for row-major matmul
        "w1": jax.random.uniform(k1, (in_features, inner), jnp.float32, -s1, s1),
        "bb1": jax.random.uniform(k2, (1, inner), jnp.float32, -s1, s1),
        "w2": jax.random.uniform(k3, (inner, out_features), jnp.float32, -s2, s2),
        "bb2": jax.random.uniform(k4, (1, out_features), jnp.float32, -s2, s2),
    }


def reference(x, params):
    """Pure-JAX reference with the same autocast quantization points."""
    x = x.astype(jnp.float32)
    w1 = params["w1"].astype(jnp.bfloat16)
    w2 = params["w2"].astype(jnp.bfloat16)
    h = _layernorm_fp32(x, params["g1"], params["b1"])
    h16 = h.astype(jnp.bfloat16)
    acc1 = jnp.dot(h16, w1, preferred_element_type=jnp.float32) + params["bb1"]
    y1f = acc1.astype(jnp.bfloat16).astype(jnp.float32)
    g16 = (0.5 * y1f * (1.0 + jax.lax.erf(y1f * _INV_SQRT2))).astype(jnp.bfloat16)
    acc2 = jnp.dot(g16, w2, preferred_element_type=jnp.float32) + params["bb2"]
    y2f = acc2.astype(jnp.bfloat16).astype(jnp.float32)
    out = _layernorm_fp32(y2f, params["g2"], params["b2"])
    return out.astype(jnp.bfloat16)


def _check(out, ref, tol=2e-2):
    err = jnp.max(jnp.abs(out.astype(jnp.float32) - ref.astype(jnp.float32)))
    assert float(err) < tol, f"max abs err {err}"


if __name__ == "__main__":
    key = jax.random.PRNGKey(0)
    kx, kp, kx2, kx3 = jax.random.split(key, 4)

    # Lane-dense toy sizes (real Wan feature dims are multiples of 128 too).
    in_features, out_features = 128, 256
    params = init_params(kp, in_features, out_features)

    # Case 1: rows = 16 (exact tile), lane/sublane-dense output.
    B, S = 2, 8
    x = jax.random.normal(kx, (B, S, in_features), dtype=jnp.float32)
    out = jax.block_until_ready(wan_image_embedding(x, params))
    assert out.shape == (B, S, out_features) and out.dtype == jnp.bfloat16
    _check(out, reference(x, params))

    # Case 2: rows = 21 (exercises row padding + slice-off path).
    B2, S2 = 3, 7
    x2 = jax.random.normal(kx2, (B2, S2, in_features), dtype=jnp.float32)
    out2 = jax.block_until_ready(wan_image_embedding(x2, params))
    assert out2.shape == (B2, S2, out_features) and out2.dtype == jnp.bfloat16
    _check(out2, reference(x2, params))

    # Case 3: bf16 input (real-pipeline dtype; exercises in-kernel upcast path).
    x3 = jax.random.normal(kx3, (B, S, in_features), dtype=jnp.float32).astype(jnp.bfloat16)
    out3 = jax.block_until_ready(wan_image_embedding(x3, params))
    assert out3.shape == (B, S, out_features) and out3.dtype == jnp.bfloat16
    _check(out3, reference(x3, params))

    print("KERNEL_OK")
</pallas_src>

<mosaic_0001>
module attributes {stable_mosaic.version = 11 : i64} {
  func.func @wan_image_embedding_kernel(%arg0: i32, %arg1: memref<16x128xf32, #tpu.memory_space<vmem>>, %arg2: memref<3x128xf32, #tpu.memory_space<vmem>>, %arg3: memref<128x128xbf16, #tpu.memory_space<vmem>>, %arg4: memref<128x256xbf16, #tpu.memory_space<vmem>>, %arg5: memref<3x256xf32, #tpu.memory_space<vmem>>, %arg6: memref<16x256xbf16, #tpu.memory_space<vmem>>) attributes {dimension_semantics = [#tpu.dimension_semantics<parallel>], iteration_bounds = array<i64: 1>, scalar_prefetch = 0 : i64, scratch_operands = 0 : i64, tpu.core_type = #tpu.core_type<tc>, window_params = [{transform_indices = @transform_0, window_bounds = array<i64: 16, 128>}, {pipeline_mode = #tpu.pipeline_mode<synchronous>, transform_indices = @transform_1, window_bounds = array<i64: 3, 128>}, {pipeline_mode = #tpu.pipeline_mode<synchronous>, transform_indices = @transform_2, window_bounds = array<i64: 128, 128>}, {pipeline_mode = #tpu.pipeline_mode<synchronous>, transform_indices = @transform_3, window_bounds = array<i64: 128, 256>}, {pipeline_mode = #tpu.pipeline_mode<synchronous>, transform_indices = @transform_4, window_bounds = array<i64: 3, 256>}, {transform_indices = @transform_5, window_bounds = array<i64: 16, 256>}]} {
    %c0 = arith.constant 0 : index
    %c0_0 = arith.constant 0 : index
    %0 = vector.load %arg2[%c0, %c0_0] : memref<3x128xf32, #tpu.memory_space<vmem>>, vector<1x128xf32>
    %c1 = arith.constant 1 : index
    %c0_1 = arith.constant 0 : index
    %1 = vector.load %arg2[%c1, %c0_1] : memref<3x128xf32, #tpu.memory_space<vmem>>, vector<1x128xf32>
    %c2 = arith.constant 2 : index
    %c0_2 = arith.constant 0 : index
    %2 = vector.load %arg2[%c2, %c0_2] : memref<3x128xf32, #tpu.memory_space<vmem>>, vector<1x128xf32>
    %c0_3 = arith.constant 0 : index
    %c0_4 = arith.constant 0 : index
    %3 = vector.load %arg5[%c0_3, %c0_4] : memref<3x256xf32, #tpu.memory_space<vmem>>, vector<1x256xf32>
    %c1_5 = arith.constant 1 : index
    %c0_6 = arith.constant 0 : index
    %4 = vector.load %arg5[%c1_5, %c0_6] : memref<3x256xf32, #tpu.memory_space<vmem>>, vector<1x256xf32>
    %c2_7 = arith.constant 2 : index
    %c0_8 = arith.constant 0 : index
    %5 = vector.load %arg5[%c2_7, %c0_8] : memref<3x256xf32, #tpu.memory_space<vmem>>, vector<1x256xf32>
    %c0_9 = arith.constant 0 : index
    %c0_10 = arith.constant 0 : index
    %6 = vector.load %arg1[%c0_9, %c0_10] : memref<16x128xf32, #tpu.memory_space<vmem>>, vector<16x128xf32>
    %cst = arith.constant dense<0.000000e+00> : vector<16xf32>
    %7 = vector.multi_reduction <add>, %6, %cst [1] : vector<16x128xf32> to vector<16xf32>
    %8 = vector.shape_cast %7 : vector<16xf32> to vector<16x1xf32>
    %cst_11 = arith.constant 1.280000e+02 : f32
    %9 = vector.broadcast %cst_11 : f32 to vector<16x1xf32>
    %10 = arith.divf %8, %9 : vector<16x1xf32>
    %11 = arith.mulf %6, %6 : vector<16x128xf32>
    %cst_12 = arith.constant dense<0.000000e+00> : vector<16xf32>
    %12 = vector.multi_reduction <add>, %11, %cst_12 [1] : vector<16x128xf32> to vector<16xf32>
    %13 = vector.shape_cast %12 : vector<16xf32> to vector<16x1xf32>
    %cst_13 = arith.constant 1.280000e+02 : f32
    %14 = vector.broadcast %cst_13 : f32 to vector<16x1xf32>
    %15 = arith.divf %13, %14 : vector<16x1xf32>
    %16 = arith.mulf %10, %10 : vector<16x1xf32>
    %17 = arith.subf %15, %16 : vector<16x1xf32>
    %cst_14 = arith.constant 0.000000e+00 : f32
    %18 = vector.broadcast %cst_14 : f32 to vector<16x1xf32>
    %19 = arith.maximumf %17, %18 : vector<16x1xf32>
    %20 = vector.broadcast %10 : vector<16x1xf32> to vector<16x128xf32>
    %21 = arith.subf %6, %20 : vector<16x128xf32>
    %cst_15 = arith.constant 9.99999974E-6 : f32
    %22 = vector.broadcast %cst_15 : f32 to vector<16x1xf32>
    %23 = arith.addf %19, %22 : vector<16x1xf32>
    %24 = math.rsqrt %23 : vector<16x1xf32>
    %25 = vector.broadcast %24 : vector<16x1xf32> to vector<16x128xf32>
    %26 = arith.mulf %21, %25 : vector<16x128xf32>
    %27 = vector.broadcast %0 : vector<1x128xf32> to vector<16x128xf32>
    %28 = arith.mulf %26, %27 : vector<16x128xf32>
    %29 = vector.broadcast %1 : vector<1x128xf32> to vector<16x128xf32>
    %30 = arith.addf %28, %29 : vector<16x128xf32>
    %31 = arith.truncf %30 : vector<16x128xf32> to vector<16x128xbf16>
    %c0_16 = arith.constant 0 : index
    %c0_17 = arith.constant 0 : index
    %32 = vector.load %arg3[%c0_16, %c0_17] : memref<128x128xbf16, #tpu.memory_space<vmem>>, vector<128x128xbf16>
    %cst_18 = arith.constant dense<0.000000e+00> : vector<16x128xf32>
    %33 = tpu.matmul %31, %32, %cst_18 {dimension_numbers = #tpu.dot_dimension_numbers<[1], [0], [0], [1], [0, 0, 1, 1], [], []>} : vector<16x128xbf16>, vector<128x128xbf16>, vector<16x128xf32> -> vector<16x128xf32>
    %34 = vector.broadcast %2 : vector<1x128xf32> to vector<16x128xf32>
    %35 = arith.addf %33, %34 : vector<16x128xf32>
    %36 = arith.truncf %35 : vector<16x128xf32> to vector<16x128xbf16>
    %37 = arith.extf %36 : vector<16x128xbf16> to vector<16x128xf32>
    %cst_19 = arith.constant 5.000000e-01 : f32
    %38 = vector.broadcast %cst_19 : f32 to vector<16x128xf32>
    %39 = arith.mulf %38, %37 : vector<16x128xf32>
    %cst_20 = arith.constant 0.707106769 : f32
    %40 = vector.broadcast %cst_20 : f32 to vector<16x128xf32>
    %41 = arith.mulf %37, %40 : vector<16x128xf32>
    %42 = math.erf %41 : vector<16x128xf32>
    %cst_21 = arith.constant 1.000000e+00 : f32
    %43 = vector.broadcast %cst_21 : f32 to vector<16x128xf32>
    %44 = arith.addf %43, %42 : vector<16x128xf32>
    %45 = arith.mulf %39, %44 : vector<16x128xf32>
    %46 = arith.truncf %45 : vector<16x128xf32> to vector<16x128xbf16>
    %c0_22 = arith.constant 0 : index
    %c0_23 = arith.constant 0 : index
    %47 = vector.load %arg4[%c0_22, %c0_23] : memref<128x256xbf16, #tpu.memory_space<vmem>>, vector<128x256xbf16>
    %cst_24 = arith.constant dense<0.000000e+00> : vector<16x256xf32>
    %48 = tpu.matmul %46, %47, %cst_24 {dimension_numbers = #tpu.dot_dimension_numbers<[1], [0], [0], [1], [0, 0, 1, 1], [], []>} : vector<16x128xbf16>, vector<128x256xbf16>, vector<16x256xf32> -> vector<16x256xf32>
    %49 = vector.broadcast %3 : vector<1x256xf32> to vector<16x256xf32>
    %50 = arith.addf %48, %49 : vector<16x256xf32>
    %51 = arith.truncf %50 : vector<16x256xf32> to vector<16x256xbf16>
    %52 = arith.extf %51 : vector<16x256xbf16> to vector<16x256xf32>
    %cst_25 = arith.constant dense<0.000000e+00> : vector<16xf32>
    %53 = vector.multi_reduction <add>, %52, %cst_25 [1] : vector<16x256xf32> to vector<16xf32>
    %54 = vector.shape_cast %53 : vector<16xf32> to vector<16x1xf32>
    %cst_26 = arith.constant 2.560000e+02 : f32
    %55 = vector.broadcast %cst_26 : f32 to vector<16x1xf32>
    %56 = arith.divf %54, %55 : vector<16x1xf32>
    %57 = arith.mulf %52, %52 : vector<16x256xf32>
    %cst_27 = arith.constant dense<0.000000e+00> : vector<16xf32>
    %58 = vector.multi_reduction <add>, %57, %cst_27 [1] : vector<16x256xf32> to vector<16xf32>
    %59 = vector.shape_cast %58 : vector<16xf32> to vector<16x1xf32>
    %cst_28 = arith.constant 2.560000e+02 : f32
    %60 = vector.broadcast %cst_28 : f32 to vector<16x1xf32>
    %61 = arith.divf %59, %60 : vector<16x1xf32>
    %62 = arith.mulf %56, %56 : vector<16x1xf32>
    %63 = arith.subf %61, %62 : vector<16x1xf32>
    %cst_29 = arith.constant 0.000000e+00 : f32
    %64 = vector.broadcast %cst_29 : f32 to vector<16x1xf32>
    %65 = arith.maximumf %63, %64 : vector<16x1xf32>
    %66 = vector.broadcast %56 : vector<16x1xf32> to vector<16x256xf32>
    %67 = arith.subf %52, %66 : vector<16x256xf32>
    %cst_30 = arith.constant 9.99999974E-6 : f32
    %68 = vector.broadcast %cst_30 : f32 to vector<16x1xf32>
    %69 = arith.addf %65, %68 : vector<16x1xf32>
    %70 = math.rsqrt %69 : vector<16x1xf32>
    %71 = vector.broadcast %70 : vector<16x1xf32> to vector<16x256xf32>
    %72 = arith.mulf %67, %71 : vector<16x256xf32>
    %73 = vector.broadcast %4 : vector<1x256xf32> to vector<16x256xf32>
    %74 = arith.mulf %72, %73 : vector<16x256xf32>
    %75 = vector.broadcast %5 : vector<1x256xf32> to vector<16x256xf32>
    %76 = arith.addf %74, %75 : vector<16x256xf32>
    %77 = arith.truncf %76 : vector<16x256xf32> to vector<16x256xbf16>
    %c0_31 = arith.constant 0 : index
    %c0_32 = arith.constant 0 : index
    %78 = vector.load %arg6[%c0_31, %c0_32] : memref<16x256xbf16, #tpu.memory_space<vmem>>, vector<16x256xbf16>
    tpu.vector_store %arg6[%c0_31, %c0_32], %77 {strides = array<i32>} : memref<16x256xbf16, #tpu.memory_space<vmem>>, vector<16x256xbf16>,
    return
  }
  func.func @transform_0(%arg0: i32) -> (i32, i32) {
    %c0_i32 = arith.constant 0 : i32
    %c0_i32_0 = arith.constant 0 : i32
    return %arg0, %c0_i32 : i32, i32
  }
  func.func @transform_1(%arg0: i32) -> (i32, i32) {
    %c0_i32 = arith.constant 0 : i32
    %c0_i32_0 = arith.constant 0 : i32
    %c0_i32_1 = arith.constant 0 : i32
    return %c0_i32, %c0_i32_0 : i32, i32
  }
  func.func @transform_2(%arg0: i32) -> (i32, i32) {
    %c0_i32 = arith.constant 0 : i32
    %c0_i32_0 = arith.constant 0 : i32
    %c0_i32_1 = arith.constant 0 : i32
    return %c0_i32, %c0_i32_0 : i32, i32
  }
  func.func @transform_3(%arg0: i32) -> (i32, i32) {
    %c0_i32 = arith.constant 0 : i32
    %c0_i32_0 = arith.constant 0 : i32
    %c0_i32_1 = arith.constant 0 : i32
    return %c0_i32, %c0_i32_0 : i32, i32
  }
  func.func @transform_4(%arg0: i32) -> (i32, i32) {
    %c0_i32 = arith.constant 0 : i32
    %c0_i32_0 = arith.constant 0 : i32
    %c0_i32_1 = arith.constant 0 : i32
    return %c0_i32, %c0_i32_0 : i32, i32
  }
  func.func @transform_5(%arg0: i32) -> (i32, i32) {
    %c0_i32 = arith.constant 0 : i32
    %c0_i32_0 = arith.constant 0 : i32
    return %arg0, %c0_i32 : i32, i32
  }
}

module attributes {stable_mosaic.version = 11 : i64} {
  func.func @wan_image_embedding_kernel(%arg0: i32, %arg1: memref<16x128xf32, #tpu.memory_space<vmem>>, %arg2: memref<3x128xf32, #tpu.memory_space<vmem>>, %arg3: memref<128x128xbf16, #tpu.memory_space<vmem>>, %arg4: memref<128x256xbf16, #tpu.memory_space<vmem>>, %arg5: memref<3x256xf32, #tpu.memory_space<vmem>>, %arg6: memref<16x256xbf16, #tpu.memory_space<vmem>>) attributes {dimension_semantics = [#tpu.dimension_semantics<parallel>], iteration_bounds = array<i64: 1>, scalar_prefetch = 0 : i64, scratch_operands = 0 : i64, tpu.core_type = #tpu.core_type<tc>, window_params = [{transform_indices = @transform_0, window_bounds = array<i64: 16, 128>}, {pipeline_mode = #tpu.pipeline_mode<synchronous>, transform_indices = @transform_1, window_bounds = array<i64: 3, 128>}, {pipeline_mode = #tpu.pipeline_mode<synchronous>, transform_indices = @transform_2, window_bounds = array<i64: 128, 128>}, {pipeline_mode = #tpu.pipeline_mode<synchronous>, transform_indices = @transform_3, window_bounds = array<i64: 128, 256>}, {pipeline_mode = #tpu.pipeline_mode<synchronous>, transform_indices = @transform_4, window_bounds = array<i64: 3, 256>}, {transform_indices = @transform_5, window_bounds = array<i64: 16, 256>}]} {
    %c0 = arith.constant 0 : index
    %c0_0 = arith.constant 0 : index
    %0 = vector.load %arg2[%c0, %c0_0] : memref<3x128xf32, #tpu.memory_space<vmem>>, vector<1x128xf32>
    %c1 = arith.constant 1 : index
    %c0_1 = arith.constant 0 : index
    %1 = vector.load %arg2[%c1, %c0_1] : memref<3x128xf32, #tpu.memory_space<vmem>>, vector<1x128xf32>
    %c2 = arith.constant 2 : index
    %c0_2 = arith.constant 0 : index
    %2 = vector.load %arg2[%c2, %c0_2] : memref<3x128xf32, #tpu.memory_space<vmem>>, vector<1x128xf32>
    %c0_3 = arith.constant 0 : index
    %c0_4 = arith.constant 0 : index
    %3 = vector.load %arg5[%c0_3, %c0_4] : memref<3x256xf32, #tpu.memory_space<vmem>>, vector<1x256xf32>
    %c1_5 = arith.constant 1 : index
    %c0_6 = arith.constant 0 : index
    %4 = vector.load %arg5[%c1_5, %c0_6] : memref<3x256xf32, #tpu.memory_space<vmem>>, vector<1x256xf32>
    %c2_7 = arith.constant 2 : index
    %c0_8 = arith.constant 0 : index
    %5 = vector.load %arg5[%c2_7, %c0_8] : memref<3x256xf32, #tpu.memory_space<vmem>>, vector<1x256xf32>
    %c0_9 = arith.constant 0 : index
    %c0_10 = arith.constant 0 : index
    %6 = vector.load %arg1[%c0_9, %c0_10] : memref<16x128xf32, #tpu.memory_space<vmem>>, vector<16x128xf32>
    %cst = arith.constant dense<0.000000e+00> : vector<16xf32>
    %7 = vector.multi_reduction <add>, %6, %cst [1] : vector<16x128xf32> to vector<16xf32>
    %8 = vector.shape_cast %7 : vector<16xf32> to vector<16x1xf32>
    %cst_11 = arith.constant 1.280000e+02 : f32
    %9 = vector.broadcast %cst_11 : f32 to vector<16x1xf32>
    %10 = arith.divf %8, %9 : vector<16x1xf32>
    %11 = arith.mulf %6, %6 : vector<16x128xf32>
    %cst_12 = arith.constant dense<0.000000e+00> : vector<16xf32>
    %12 = vector.multi_reduction <add>, %11, %cst_12 [1] : vector<16x128xf32> to vector<16xf32>
    %13 = vector.shape_cast %12 : vector<16xf32> to vector<16x1xf32>
    %cst_13 = arith.constant 1.280000e+02 : f32
    %14 = vector.broadcast %cst_13 : f32 to vector<16x1xf32>
    %15 = arith.divf %13, %14 : vector<16x1xf32>
    %16 = arith.mulf %10, %10 : vector<16x1xf32>
    %17 = arith.subf %15, %16 : vector<16x1xf32>
    %cst_14 = arith.constant 0.000000e+00 : f32
    %18 = vector.broadcast %cst_14 : f32 to vector<16x1xf32>
    %19 = arith.maximumf %17, %18 : vector<16x1xf32>
    %20 = vector.broadcast %10 : vector<16x1xf32> to vector<16x128xf32>
    %21 = arith.subf %6, %20 : vector<16x128xf32>
    %cst_15 = arith.constant 9.99999974E-6 : f32
    %22 = vector.broadcast %cst_15 : f32 to vector<16x1xf32>
    %23 = arith.addf %19, %22 : vector<16x1xf32>
    %24 = math.rsqrt %23 : vector<16x1xf32>
    %25 = vector.broadcast %24 : vector<16x1xf32> to vector<16x128xf32>
    %26 = arith.mulf %21, %25 : vector<16x128xf32>
    %27 = vector.broadcast %0 : vector<1x128xf32> to vector<16x128xf32>
    %28 = arith.mulf %26, %27 : vector<16x128xf32>
    %29 = vector.broadcast %1 : vector<1x128xf32> to vector<16x128xf32>
    %30 = arith.addf %28, %29 : vector<16x128xf32>
    %31 = arith.truncf %30 : vector<16x128xf32> to vector<16x128xbf16>
    %c0_16 = arith.constant 0 : index
    %c0_17 = arith.constant 0 : index
    %32 = vector.load %arg3[%c0_16, %c0_17] : memref<128x128xbf16, #tpu.memory_space<vmem>>, vector<128x128xbf16>
    %cst_18 = arith.constant dense<0.000000e+00> : vector<16x128xf32>
    %33 = tpu.matmul %31, %32, %cst_18 {dimension_numbers = #tpu.dot_dimension_numbers<[1], [0], [0], [1], [0, 0, 1, 1], [], []>} : vector<16x128xbf16>, vector<128x128xbf16>, vector<16x128xf32> -> vector<16x128xf32>
    %34 = vector.broadcast %2 : vector<1x128xf32> to vector<16x128xf32>
    %35 = arith.addf %33, %34 : vector<16x128xf32>
    %36 = arith.truncf %35 : vector<16x128xf32> to vector<16x128xbf16>
    %37 = arith.extf %36 : vector<16x128xbf16> to vector<16x128xf32>
    %cst_19 = arith.constant 5.000000e-01 : f32
    %38 = vector.broadcast %cst_19 : f32 to vector<16x128xf32>
    %39 = arith.mulf %38, %37 : vector<16x128xf32>
    %cst_20 = arith.constant 0.707106769 : f32
    %40 = vector.broadcast %cst_20 : f32 to vector<16x128xf32>
    %41 = arith.mulf %37, %40 : vector<16x128xf32>
    %42 = math.erf %41 : vector<16x128xf32>
    %cst_21 = arith.constant 1.000000e+00 : f32
    %43 = vector.broadcast %cst_21 : f32 to vector<16x128xf32>
    %44 = arith.addf %43, %42 : vector<16x128xf32>
    %45 = arith.mulf %39, %44 : vector<16x128xf32>
    %46 = arith.truncf %45 : vector<16x128xf32> to vector<16x128xbf16>
    %c0_22 = arith.constant 0 : index
    %c0_23 = arith.constant 0 : index
    %47 = vector.load %arg4[%c0_22, %c0_23] : memref<128x256xbf16, #tpu.memory_space<vmem>>, vector<128x256xbf16>
    %cst_24 = arith.constant dense<0.000000e+00> : vector<16x256xf32>
    %48 = tpu.matmul %46, %47, %cst_24 {dimension_numbers = #tpu.dot_dimension_numbers<[1], [0], [0], [1], [0, 0, 1, 1], [], []>} : vector<16x128xbf16>, vector<128x256xbf16>, vector<16x256xf32> -> vector<16x256xf32>
    %49 = vector.broadcast %3 : vector<1x256xf32> to vector<16x256xf32>
    %50 = arith.addf %48, %49 : vector<16x256xf32>
    %51 = arith.truncf %50 : vector<16x256xf32> to vector<16x256xbf16>
    %52 = arith.extf %51 : vector<16x256xbf16> to vector<16x256xf32>
    %cst_25 = arith.constant dense<0.000000e+00> : vector<16xf32>
    %53 = vector.multi_reduction <add>, %52, %cst_25 [1] : vector<16x256xf32> to vector<16xf32>
    %54 = vector.shape_cast %53 : vector<16xf32> to vector<16x1xf32>
    %cst_26 = arith.constant 2.560000e+02 : f32
    %55 = vector.broadcast %cst_26 : f32 to vector<16x1xf32>
    %56 = arith.divf %54, %55 : vector<16x1xf32>
    %57 = arith.mulf %52, %52 : vector<16x256xf32>
    %cst_27 = arith.constant dense<0.000000e+00> : vector<16xf32>
    %58 = vector.multi_reduction <add>, %57, %cst_27 [1] : vector<16x256xf32> to vector<16xf32>
    %59 = vector.shape_cast %58 : vector<16xf32> to vector<16x1xf32>
    %cst_28 = arith.constant 2.560000e+02 : f32
    %60 = vector.broadcast %cst_28 : f32 to vector<16x1xf32>
    %61 = arith.divf %59, %60 : vector<16x1xf32>
    %62 = arith.mulf %56, %56 : vector<16x1xf32>
    %63 = arith.subf %61, %62 : vector<16x1xf32>
    %cst_29 = arith.constant 0.000000e+00 : f32
    %64 = vector.broadcast %cst_29 : f32 to vector<16x1xf32>
    %65 = arith.maximumf %63, %64 : vector<16x1xf32>
    %66 = vector.broadcast %56 : vector<16x1xf32> to vector<16x256xf32>
    %67 = arith.subf %52, %66 : vector<16x256xf32>
    %cst_30 = arith.constant 9.99999974E-6 : f32
    %68 = vector.broadcast %cst_30 : f32 to vector<16x1xf32>
    %69 = arith.addf %65, %68 : vector<16x1xf32>
    %70 = math.rsqrt %69 : vector<16x1xf32>
    %71 = vector.broadcast %70 : vector<16x1xf32> to vector<16x256xf32>
    %72 = arith.mulf %67, %71 : vector<16x256xf32>
    %73 = vector.broadcast %4 : vector<1x256xf32> to vector<16x256xf32>
    %74 = arith.mulf %72, %73 : vector<16x256xf32>
    %75 = vector.broadcast %5 : vector<1x256xf32> to vector<16x256xf32>
    %76 = arith.addf %74, %75 : vector<16x256xf32>
    %77 = arith.truncf %76 : vector<16x256xf32> to vector<16x256xbf16>
    %c0_31 = arith.constant 0 : index
    %c0_32 = arith.constant 0 : index
    %78 = vector.load %arg6[%c0_31, %c0_32] : memref<16x256xbf16, #tpu.memory_space<vmem>>, vector<16x256xbf16>
    tpu.vector_store %arg6[%c0_31, %c0_32], %77 {strides = array<i32>} : memref<16x256xbf16, #tpu.memory_space<vmem>>, vector<16x256xbf16>,
    return
  }
  func.func @transform_0(%arg0: i32) -> (i32, i32) {
    %c0_i32 = arith.constant 0 : i32
    %c0_i32_0 = arith.constant 0 : i32
    return %arg0, %c0_i32 : i32, i32
  }
  func.func @transform_1(%arg0: i32) -> (i32, i32) {
    %c0_i32 = arith.constant 0 : i32
    %c0_i32_0 = arith.constant 0 : i32
    %c0_i32_1 = arith.constant 0 : i32
    return %c0_i32, %c0_i32_0 : i32, i32
  }
  func.func @transform_2(%arg0: i32) -> (i32, i32) {
    %c0_i32 = arith.constant 0 : i32
    %c0_i32_0 = arith.constant 0 : i32
    %c0_i32_1 = arith.constant 0 : i32
    return %c0_i32, %c0_i32_0 : i32, i32
  }
  func.func @transform_3(%arg0: i32) -> (i32, i32) {
    %c0_i32 = arith.constant 0 : i32
    %c0_i32_0 = arith.constant 0 : i32
    %c0_i32_1 = arith.constant 0 : i32
    return %c0_i32, %c0_i32_0 : i32, i32
  }
  func.func @transform_4(%arg0: i32) -> (i32, i32) {
    %c0_i32 = arith.constant 0 : i32
    %c0_i32_0 = arith.constant 0 : i32
    %c0_i32_1 = arith.constant 0 : i32
    return %c0_i32, %c0_i32_0 : i32, i32
  }
  func.func @transform_5(%arg0: i32) -> (i32, i32) {
    %c0_i32 = arith.constant 0 : i32
    %c0_i32_0 = arith.constant 0 : i32
    return %arg0, %c0_i32 : i32, i32
  }
}

</mosaic_0001>

<llo_original>
// kernel: tpu_custom_call.1
$region0: #{tpu_custom_call.1}
  #allocation0 [shape = 'u32[]', space=smem, size = 0x4, offset = 0x4, fixed_abs, tag = 'smem constant byte address 0x4 - core index']
  #allocation1 [shape = 'u32[72,128]{1,0:T(1,128)}', space=vmem, size = 0x9000, scoped, tag = 'internal scratch']
  %s0 = inlined_call_operand.hbm [shape: f32[16,128], index: 0, kind: input, shape index: {}]
  %s1 = inlined_call_operand.hbm [shape: f32[3,128], index: 1, kind: input, shape index: {}]
  %s2 = inlined_call_operand.hbm [shape: bf16[128,128], index: 2, kind: input, shape index: {}]
  %s3 = inlined_call_operand.hbm [shape: bf16[128,256], index: 3, kind: input, shape index: {}]
  %s4 = inlined_call_operand.hbm [shape: f32[3,256], index: 4, kind: input, shape index: {}]
  %s5 = inlined_call_operand.hbm [shape: bf16[16,256], index: 5, kind: output, shape index: {}]
  %s6 = sld [smem:[#allocation0]]
  $region50: #{tpu_custom_call.1} parent=0
    _
  %s8 = ssub.s32 1, %s6
  %s9 = scalar_select 0, %s8, %s6
  $region1: #{tpu_custom_call.1} parent=0
    #allocation2 [shape = 'u8[8192]{0}', space=vmem, size = 0x2000, scoped, tag = 'input window, operand 0, single buffered']
    #allocation3 [shape = 's32[1]{0}', space=sflag, size = 0x4, scoped, tag = 'scoped memory for tpu_custom_call.1']
    #allocation4 [shape = 's32[1]{0}', space=sflag, size = 0x4, scoped, tag = 'scoped memory for tpu_custom_call.1']
    #allocation5 [shape = 'u8[2048]{0}', space=vmem, size = 0x800, scoped, tag = 'input window, operand 1, single buffered']
    #allocation6 [shape = 's32[1]{0}', space=sflag, size = 0x4, scoped, tag = 'scoped memory for tpu_custom_call.1']
    #allocation7 [shape = 'u8[32768]{0}', space=vmem, size = 0x8000, scoped, tag = 'input window, operand 2, single buffered']
    #allocation8 [shape = 'u8[65536]{0}', space=vmem, size = 0x10000, scoped, tag = 'input window, operand 3, single buffered']
    #allocation9 [shape = 's32[1]{0}', space=sflag, size = 0x4, scoped, tag = 'scoped memory for tpu_custom_call.1']
    #allocation10 [shape = 'u8[4096]{0}', space=vmem, size = 0x1000, scoped, tag = 'input window, operand 4, single buffered']
    #allocation11 [shape = 'u8[8192]{0}', space=vmem, size = 0x2000, scoped, tag = 'output window, operand 0, single buffered']
    %10 = vsyncpa [#allocation3], 0
    %11 = vsyncpa [#allocation6], 0
    %12 = vsyncpa [#allocation9], 0
    %13 = vsyncpa [#allocation4], 0
    // Predicated region
    $region2: #{tpu_custom_call.1} parent=1 // pred_check
      _
    $region3: #{tpu_custom_call.1} parent=1 // pred_check_branch
      %15 = sbr.rel (0) target = $region5
    $region4: #{tpu_custom_call.1} parent=1 // pred_region
      %17 = vsyncadd [#allocation3], 0
      %s18 = sshll.u32 %s0, 4
      %s19 = int_to_ptr.hbm [resolvable:$true] %s18
      %s20 = sshll.u32 [#allocation2], 4
      %s21 = int_to_ptr.vmem [resolvable:$true] %s20
      %26 = dma.hbm_to_vmem [thread:$0]  %s19, 256, %s21, [#allocation3], 128, 128, 8
    $region5: #{tpu_custom_call.1} parent=1 // pred_fallthru
      _
    // Predicated region
    $region6: #{tpu_custom_call.1} parent=1 // pred_check
      _
    $region7: #{tpu_custom_call.1} parent=1 // pred_check_branch
      %28 = sbr.rel (0) target = $region9
    $region8: #{tpu_custom_call.1} parent=1 // pred_region
      %30 = vsyncadd [#allocation6], 0
      %s32 = sshll.u32 %s1, 4
      %s33 = int_to_ptr.hbm [resolvable:$true] %s32
      %s34 = sshll.u32 [#allocation5], 4
      %s35 = int_to_ptr.vmem [resolvable:$true] %s34
      %37 = dma.hbm_to_vmem [thread:$0]  %s33, 64, %s35, [#allocation6]
    $region9: #{tpu_custom_call.1} parent=1 // pred_fallthru
      _
    // Predicated region
    $region10: #{tpu_custom_call.1} parent=1 // pred_check
      _
    $region11: #{tpu_custom_call.1} parent=1 // pred_check_branch
      %39 = sbr.rel (0) target = $region13
    $region12: #{tpu_custom_call.1} parent=1 // pred_region
      %41 = vsyncadd [#allocation6], 0
      %s42 = sshll.u32 %s2, 4
      %s43 = int_to_ptr.hbm [resolvable:$true] %s42
      %s44 = sshll.u32 [#allocation7], 4
      %s45 = int_to_ptr.vmem [resolvable:$true] %s44
      %50 = dma.hbm_to_vmem [thread:$0]  %s43, 1024, %s45, [#allocation6], 64, 64, 4
    $region13: #{tpu_custom_call.1} parent=1 // pred_fallthru
      _
    // Predicated region
    $region14: #{tpu_custom_call.1} parent=1 // pred_check
      _
    $region15: #{tpu_custom_call.1} parent=1 // pred_check_branch
      %52 = sbr.rel (0) target = $region17
    $region16: #{tpu_custom_call.1} parent=1 // pred_region
      %54 = vsyncadd [#allocation9], 0
      %s55 = sshll.u32 %s3, 4
      %s56 = int_to_ptr.hbm [resolvable:$true] %s55
      %s57 = sshll.u32 [#allocation8], 4
      %s58 = int_to_ptr.vmem [resolvable:$true] %s57
      %63 = dma.hbm_to_vmem [thread:$0]  %s56, 2048, %s58, [#allocation9], 128, 128, 8
    $region17: #{tpu_custom_call.1} parent=1 // pred_fallthru
      _
    // Predicated region
    $region18: #{tpu_custom_call.1} parent=1 // pred_check
      _
    $region19: #{tpu_custom_call.1} parent=1 // pred_check_branch
      %65 = sbr.rel (0) target = $region21
    $region20: #{tpu_custom_call.1} parent=1 // pred_region
      %67 = vsyncadd [#allocation9], 0
      %s69 = sshll.u32 %s4, 4
      %s70 = int_to_ptr.hbm [resolvable:$true] %s69
      %s71 = sshll.u32 [#allocation10], 4
      %s72 = int_to_ptr.vmem [resolvable:$true] %s71
      %74 = dma.hbm_to_vmem [thread:$0]  %s70, 128, %s72, [#allocation9]
    $region21: #{tpu_custom_call.1} parent=1 // pred_fallthru
      _
    // Predicated region
    $region22: #{tpu_custom_call.1} parent=1 // pred_check
      _
    $region23: #{tpu_custom_call.1} parent=1 // pred_check_branch
      %76 = sbr.rel (0) target = $region25
    $region24: #{tpu_custom_call.1} parent=1 // pred_region
      %78 = dma.done [#allocation3], 256
    $region25: #{tpu_custom_call.1} parent=1 // pred_fallthru
      _
    // Predicated region
    $region26: #{tpu_custom_call.1} parent=1 // pred_check
      _
    $region27: #{tpu_custom_call.1} parent=1 // pred_check_branch
      %80 = sbr.rel (0) target = $region29
    $region28: #{tpu_custom_call.1} parent=1 // pred_region
      %82 = dma.done [#allocation6], 64
    $region29: #{tpu_custom_call.1} parent=1 // pred_fallthru
      _
    // Predicated region
    $region30: #{tpu_custom_call.1} parent=1 // pred_check
      _
    $region31: #{tpu_custom_call.1} parent=1 // pred_check_branch
      %84 = sbr.rel (0) target = $region33
    $region32: #{tpu_custom_call.1} parent=1 // pred_region
      %86 = dma.done [#allocation6], 1024
    $region33: #{tpu_custom_call.1} parent=1 // pred_fallthru
      _
    // Predicated region
    $region34: #{tpu_custom_call.1} parent=1 // pred_check
      _
    $region35: #{tpu_custom_call.1} parent=1 // pred_check_branch
      %88 = sbr.rel (0) target = $region37
    $region36: #{tpu_custom_call.1} parent=1 // pred_region
      %90 = dma.done [#allocation9], 2048
    $region37: #{tpu_custom_call.1} parent=1 // pred_fallthru
      _
    // Predicated region
    $region38: #{tpu_custom_call.1} parent=1 // pred_check
      _
    $region39: #{tpu_custom_call.1} parent=1 // pred_check_branch
      %92 = sbr.rel (0) target = $region41
    $region40: #{tpu_custom_call.1} parent=1 // pred_region
      %94 = dma.done [#allocation9], 128
    $region41: #{tpu_custom_call.1} parent=1 // pred_fallthru
      _
    %v95 = vld [vmem:[#allocation5] sm:$0x1]
    %v96 = vld [vmem:[#allocation5 + $0x1] sm:$0x1]
    %v97 = vld [vmem:[#allocation5 + $0x2] sm:$0x1]
    %v98 = vld [vmem:[#allocation10] ss:$4 sm:$0x3]
    %s99 = scalar_lea.vmem [#allocation10], 1
    %v100 = vld [vmem:[%s99] ss:$4 sm:$0x3]
    %s101 = scalar_lea.vmem [#allocation10], 2
    %v102 = vld [vmem:[%s101] ss:$4 sm:$0x3]
    %v103 = vld [vmem:[#allocation2] sm:$0xff]
    %v104 = vld [vmem:[#allocation2 + $0x8] sm:$0xff]
    %105 = vadd.xlane.f32.xlu0 %v103
    %v106 = vpop.xlane.xlu0 %105
    %107 = vadd.xlane.f32.xlu0 %v104
    %v108 = vpop.xlane.xlu0 %107
    %v109 = vrcp.pop 128.0
    %v110 = vmul.f32 128.0, %v109
    %v111 = vsub.f32 1.0, %v110
    %v112 = vmul.f32 %v109, %v111
    %v113 = vadd.f32 %v109, %v112
    %vm114 = vweird.f32 %v109
    %v115 = vsel %vm114, %v109, %v113
    %v116 = vmul.f32 %v106, %v115
    %v117 = vmul.f32 %v108, %v115
    %v118 = vmul.f32 %v103, %v103
    %v119 = vmul.f32 %v104, %v104
    %120 = vadd.xlane.f32.xlu0 %v118
    %v121 = vpop.xlane.xlu0 %120
    %122 = vadd.xlane.f32.xlu0 %v119
    %v123 = vpop.xlane.xlu0 %122
    %v124 = vmul.f32 %v121, %v115
    %v125 = vmul.f32 %v123, %v115
    %v126 = vmul.f32 %v116, %v116
    %v127 = vmul.f32 %v117, %v117
    %v128 = vsub.f32 %v124, %v126
    %v129 = vsub.f32 %v125, %v127
    %v130 = vmax.f32 %v128, 0.0
    %v131 = vmax.f32 %v129, 0.0
    %v132 = vsub.f32 %v103, %v116
    %v133 = vsub.f32 %v104, %v117
    %v134 = vadd.f32 %v130, 1e-05
    %v135 = vadd.f32 %v131, 1e-05
    %v136 = vrsqrt.pop %v134
    %v137 = vmul.f32 %v136, %v134
    %v138 = vmul.f32 %v137, %v136
    %v139 = vmul.f32 0.5, %v138
    %v140 = vsub.f32 1.5, %v139
    %v141 = vmul.f32 %v136, %v140
    %vm142 = vweird.f32 %v134
    %vm143 = vweird.f32 %v136
    %vm144 = vmor %vm142, %vm143
    %v145 = vsel %vm144, %v136, %v141
    %v146 = vrsqrt.pop %v135
    %v147 = vmul.f32 %v146, %v135
    %v148 = vmul.f32 %v147, %v146
    %v149 = vmul.f32 0.5, %v148
    %v150 = vsub.f32 1.5, %v149
    %v151 = vmul.f32 %v146, %v150
    %vm152 = vweird.f32 %v135
    %vm153 = vweird.f32 %v146
    %vm154 = vmor %vm152, %vm153
    %v155 = vsel %vm154, %v146, %v151
    %v156 = vmul.f32 %v132, %v145
    %v157 = vmul.f32 %v133, %v155
    %v158 = vperm.slane %v95, 0
    %v159 = vmul.f32 %v156, %v158
    %v160 = vmul.f32 %v157, %v158
    %v161 = vperm.slane %v96, 0
    %v162 = vadd.f32 %v159, %v161
    %v163 = vadd.f32 %v160, %v161
    %v164 = vpack.c.bf16 %v163, %v162
    %v165 = vld [vmem:[#allocation7] sm:$0xf]
    %v166 = vld [vmem:[#allocation7 + $0x4] sm:$0xf]
    %v167 = vld [vmem:[#allocation7 + $0x8] sm:$0xf]
    %v168 = vld [vmem:[#allocation7 + $0xc] sm:$0xf]
    %v169 = vld [vmem:[#allocation7 + $0x10] sm:$0xf]
    %v170 = vld [vmem:[#allocation7 + $0x14] sm:$0xf]
    %v171 = vld [vmem:[#allocation7 + $0x18] sm:$0xf]
    %v172 = vld [vmem:[#allocation7 + $0x1c] sm:$0xf]
    %v173 = vld [vmem:[#allocation7 + $0x20] sm:$0xf]
    %v174 = vld [vmem:[#allocation7 + $0x24] sm:$0xf]
    %v175 = vld [vmem:[#allocation7 + $0x28] sm:$0xf]
    %v176 = vld [vmem:[#allocation7 + $0x2c] sm:$0xf]
    %v177 = vld [vmem:[#allocation7 + $0x30] sm:$0xf]
    %v178 = vld [vmem:[#allocation7 + $0x34] sm:$0xf]
    %v179 = vld [vmem:[#allocation7 + $0x38] sm:$0xf]
    %v180 = vld [vmem:[#allocation7 + $0x3c] sm:$0xf]
    %v181 = vperm.slane %v97, 0
    %v198 = vunpack.c.l.b16 %v165
    %v199 = vunpack.c.l.b16 %v166
    %v200 = vunpack.c.l.b16 %v167
    %v201 = vunpack.c.l.b16 %v168
    %v202 = vunpack.c.l.b16 %v169
    %v203 = vunpack.c.l.b16 %v170
    %v204 = vunpack.c.l.b16 %v171
    %v205 = vunpack.c.l.b16 %v172
    %v206 = vunpack.c.l.b16 %v173
    %v207 = vunpack.c.l.b16 %v174
    %v208 = vunpack.c.l.b16 %v175
    %v209 = vunpack.c.l.b16 %v176
    %v210 = vunpack.c.l.b16 %v177
    %v211 = vunpack.c.l.b16 %v178
    %v212 = vunpack.c.l.b16 %v179
    %v213 = vunpack.c.l.b16 %v180
    %v214 = vpack.c.b16 %v199, %v198
    %v215 = vpack.c.b16 %v201, %v200
    %v216 = vpack.c.b16 %v203, %v202
    %v217 = vpack.c.b16 %v205, %v204
    %v218 = vpack.c.b16 %v207, %v206
    %v219 = vpack.c.b16 %v209, %v208
    %v220 = vpack.c.b16 %v211, %v210
    %v221 = vpack.c.b16 %v213, %v212
    %230 = vmatpush.bf16.msra.mxu0 %v221
    %231 = vmatpush.bf16.msra.mxu0 %v220
    %232 = vmatpush.bf16.msra.mxu0 %v219
    %233 = vmatpush.bf16.msra.mxu0 %v218
    %234 = vmatpush.bf16.msra.mxu0 %v217
    %235 = vmatpush.bf16.msra.mxu0 %v216
    %236 = vmatpush.bf16.msra.mxu0 %v215
    %237 = vmatpush.bf16.msra.mxu0 %v214
    %238 = vmatmul.bf16.gmra.mxu0 %v164
    %v239 = vpop.f32.mrf.mxu0
    %v240 = vadd.f32 %v181, %v239
    %v241 = vpop.f32.mrf.mxu0
    %v242 = vadd.f32 %v181, %v241
    %243 = vdwg.mxu0
    %v244 = vpack.c.bf16 %v240, %v240
    %v245 = vpack.c.bf16 %v242, %v242
    %v246 = vunpack.c.l.bf16 %v244
    %v247 = vunpack.c.l.bf16 %v245
    %v248 = vmul.f32 %v246, 0.5
    %v249 = vmul.f32 %v247, 0.5
    %v250 = vmul.f32 %v246, 0.70710677
    %v251 = vmul.f32 %v247, 0.70710677
    %v252 = vmul.f32 %v250, %v250
    %v253 = vmin.f32 16.0, %v252
    %v254 = vmul.f32 %v253, 2.1237322e-06
    %v255 = vadd.f32 %v254, 0.00028619796
    %v256 = vmul.f32 %v253, %v255
    %v257 = vadd.f32 %v256, 0.0036580483
    %v258 = vmul.f32 %v253, %v257
    %v259 = vadd.f32 %v258, 0.05243302
    %v260 = vmul.f32 %v253, %v259
    %v261 = vadd.f32 %v260, 0.18741608
    %v262 = vmul.f32 %v253, %v261
    %v263 = vadd.f32 %v262, 1.1283791
    %v264 = vmul.f32 %v250, %v263
    %v265 = vmul.f32 %v253, 3.8918573e-05
    %v266 = vadd.f32 %v265, 0.001143296
    %v267 = vmul.f32 %v253, %v266
    %v268 = vadd.f32 %v267, 0.014752088
    %v269 = vmul.f32 %v253, %v268
    %v270 = vadd.f32 %v269, 0.112945676
    %v271 = vmul.f32 %v253, %v270
    %v272 = vadd.f32 %v271, 0.4994258
    %v273 = vmul.f32 %v253, %v272
    %v274 = vadd.f32 %v273, 1.0
    %v275 = vrcp.pop %v274
    %v276 = vmul.f32 %v274, %v275
    %v277 = vsub.f32 1.0, %v276
    %v278 = vmul.f32 %v275, %v277
    %v279 = vadd.f32 %v275, %v278
    %vm280 = vweird.f32 %v274
    %vm281 = vweird.f32 %v275
    %vm282 = vmor %vm280, %vm281
    %v283 = vsel %vm282, %v275, %v279
    %v284 = vand.u32 2147483647, %v274
    %vm285 = vcmp.eq.f32.partialorder %v284, 8.507059e+37
    %v286 = vand.u32 %v274, 2147483648
    %v287 = vor.u32 1.1754944e-38, %v286
    %v288 = vsel %vm285, %v287, %v283
    %v289 = vmul.f32 %v264, %v288
    %v290 = vmin.f32 %v289, 1.0
    %v291 = vmax.f32 %v290, -1.0
    %v292 = vmul.f32 %v251, %v251
    %v293 = vmin.f32 16.0, %v292
    %v294 = vmul.f32 %v293, 2.1237322e-06
    %v295 = vadd.f32 %v294, 0.00028619796
    %v296 = vmul.f32 %v293, %v295
    %v297 = vadd.f32 %v296, 0.0036580483
    %v298 = vmul.f32 %v293, %v297
    %v299 = vadd.f32 %v298, 0.05243302
    %v300 = vmul.f32 %v293, %v299
    %v301 = vadd.f32 %v300, 0.18741608
    %v302 = vmul.f32 %v293, %v301
    %v303 = vadd.f32 %v302, 1.1283791
    %v304 = vmul.f32 %v251, %v303
    %v305 = vmul.f32 %v293, 3.8918573e-05
    %v306 = vadd.f32 %v305, 0.001143296
    %v307 = vmul.f32 %v293, %v306
    %v308 = vadd.f32 %v307, 0.014752088
    %v309 = vmul.f32 %v293, %v308
    %v310 = vadd.f32 %v309, 0.112945676
    %v311 = vmul.f32 %v293, %v310
    %v312 = vadd.f32 %v311, 0.4994258
    %v313 = vmul.f32 %v293, %v312
    %v314 = vadd.f32 %v313, 1.0
    %v315 = vrcp.pop %v314
    %v316 = vmul.f32 %v314, %v315
    %v317 = vsub.f32 1.0, %v316
    %v318 = vmul.f32 %v315, %v317
    %v319 = vadd.f32 %v315, %v318
    %vm320 = vweird.f32 %v314
    %vm321 = vweird.f32 %v315
    %vm322 = vmor %vm320, %vm321
    %v323 = vsel %vm322, %v315, %v319
    %v324 = vand.u32 2147483647, %v314
    %vm325 = vcmp.eq.f32.partialorder %v324, 8.507059e+37
    %v326 = vand.u32 %v314, 2147483648
    %v327 = vor.u32 1.1754944e-38, %v326
    %v328 = vsel %vm325, %v327, %v323
    %v329 = vmul.f32 %v304, %v328
    %v330 = vmin.f32 %v329, 1.0
    %v331 = vmax.f32 %v330, -1.0
    %v332 = vadd.f32 %v291, 1.0
    %v333 = vadd.f32 %v331, 1.0
    %v334 = vmul.f32 %v248, %v332
    %v335 = vmul.f32 %v249, %v333
    %v336 = vpack.c.bf16 %v335, %v334
    %v337 = vld [vmem:[#allocation8] sm:$0xff]
    %v338 = vld [vmem:[#allocation8 + $0x8] sm:$0xff]
    %v339 = vld [vmem:[#allocation8 + $0x10] sm:$0xff]
    %v340 = vld [vmem:[#allocation8 + $0x18] sm:$0xff]
    %v341 = vld [vmem:[#allocation8 + $0x20] sm:$0xff]
    %v342 = vld [vmem:[#allocation8 + $0x28] sm:$0xff]
    %v343 = vld [vmem:[#allocation8 + $0x30] sm:$0xff]
    %v344 = vld [vmem:[#allocation8 + $0x38] sm:$0xff]
    %v345 = vld [vmem:[#allocation8 + $0x40] sm:$0xff]
    %v346 = vld [vmem:[#allocation8 + $0x48] sm:$0xff]
    %v347 = vld [vmem:[#allocation8 + $0x50] sm:$0xff]
    %v348 = vld [vmem:[#allocation8 + $0x58] sm:$0xff]
    %v349 = vld [vmem:[#allocation8 + $0x60] sm:$0xff]
    %v350 = vld [vmem:[#allocation8 + $0x68] sm:$0xff]
    %v351 = vld [vmem:[#allocation8 + $0x70] sm:$0xff]
    %v352 = vld [vmem:[#allocation8 + $0x78] sm:$0xff]
    %v354 = vperm.slane %v98, 0
    %v355 = vperm.slane %v98, 1
    %v374 = vunpack.c.l.b16 %v337
    %v375 = vunpack.c.h.b16 %v337
    %v376 = vunpack.c.l.b16 %v338
    %v377 = vunpack.c.h.b16 %v338
    %v378 = vunpack.c.l.b16 %v339
    %v379 = vunpack.c.h.b16 %v339
    %v380 = vunpack.c.l.b16 %v340
    %v381 = vunpack.c.h.b16 %v340
    %v382 = vunpack.c.l.b16 %v341
    %v383 = vunpack.c.h.b16 %v341
    %v384 = vunpack.c.l.b16 %v342
    %v385 = vunpack.c.h.b16 %v342
    %v386 = vunpack.c.l.b16 %v343
    %v387 = vunpack.c.h.b16 %v343
    %v388 = vunpack.c.l.b16 %v344
    %v389 = vunpack.c.h.b16 %v344
    %v390 = vunpack.c.l.b16 %v345
    %v391 = vunpack.c.h.b16 %v345
    %v392 = vunpack.c.l.b16 %v346
    %v393 = vunpack.c.h.b16 %v346
    %v394 = vunpack.c.l.b16 %v347
    %v395 = vunpack.c.h.b16 %v347
    %v396 = vunpack.c.l.b16 %v348
    %v397 = vunpack.c.h.b16 %v348
    %v398 = vunpack.c.l.b16 %v349
    %v399 = vunpack.c.h.b16 %v349
    %v400 = vunpack.c.l.b16 %v350
    %v401 = vunpack.c.h.b16 %v350
    %v402 = vunpack.c.l.b16 %v351
    %v403 = vunpack.c.h.b16 %v351
    %v404 = vunpack.c.l.b16 %v352
    %v405 = vunpack.c.h.b16 %v352
    %v406 = vpack.c.b16 %v376, %v374
    %v407 = vpack.c.b16 %v377, %v375
    %v408 = vpack.c.b16 %v380, %v378
    %v409 = vpack.c.b16 %v381, %v379
    %v410 = vpack.c.b16 %v384, %v382
    %v411 = vpack.c.b16 %v385, %v383
    %v412 = vpack.c.b16 %v388, %v386
    %v413 = vpack.c.b16 %v389, %v387
    %v414 = vpack.c.b16 %v392, %v390
    %v415 = vpack.c.b16 %v393, %v391
    %v416 = vpack.c.b16 %v396, %v394
    %v417 = vpack.c.b16 %v397, %v395
    %v418 = vpack.c.b16 %v400, %v398
    %v419 = vpack.c.b16 %v401, %v399
    %v420 = vpack.c.b16 %v404, %v402
    %v421 = vpack.c.b16 %v405, %v403
    %438 = vmatpush.bf16.msra.mxu0 %v420
    %439 = vmatpush.bf16.msra.mxu0 %v418
    %440 = vmatpush.bf16.msra.mxu0 %v416
    %441 = vmatpush.bf16.msra.mxu0 %v414
    %442 = vmatpush.bf16.msra.mxu0 %v412
    %443 = vmatpush.bf16.msra.mxu0 %v410
    %444 = vmatpush.bf16.msra.mxu0 %v408
    %445 = vmatpush.bf16.msra.mxu0 %v406
    %446 = vmatmul.bf16.gmra.mxu0 %v336
    %v447 = vpop.f32.mrf.mxu0
    %v448 = vadd.f32 %v354, %v447
    %v449 = vpop.f32.mrf.mxu0
    %v450 = vadd.f32 %v354, %v449
    %451 = vdwg.mxu0
    %452 = vmatpush.bf16.msra.mxu0 %v421
    %453 = vmatpush.bf16.msra.mxu0 %v419
    %454 = vmatpush.bf16.msra.mxu0 %v417
    %455 = vmatpush.bf16.msra.mxu0 %v415
    %456 = vmatpush.bf16.msra.mxu0 %v413
    %457 = vmatpush.bf16.msra.mxu0 %v411
    %458 = vmatpush.bf16.msra.mxu0 %v409
    %459 = vmatpush.bf16.msra.mxu0 %v407
    %460 = vmatmul.bf16.gmra.mxu0 %v336
    %v461 = vpop.f32.mrf.mxu0
    %v462 = vadd.f32 %v355, %v461
    %v463 = vpop.f32.mrf.mxu0
    %v464 = vadd.f32 %v355, %v463
    %465 = vdwg.mxu0
    %v466 = vpack.c.bf16 %v462, %v448
    %v467 = vpack.c.bf16 %v464, %v450
    %v468 = vunpack.c.l.bf16 %v466
    %v469 = vunpack.c.h.bf16 %v466
    %v470 = vunpack.c.l.bf16 %v467
    %v471 = vunpack.c.h.bf16 %v467
    %v472 = vadd.f32 %v468, %v469
    %473 = vadd.xlane.f32.xlu0 %v472
    %v474 = vpop.xlane.xlu0 %473
    %v475 = vadd.f32 %v470, %v471
    %476 = vadd.xlane.f32.xlu0 %v475
    %v477 = vpop.xlane.xlu0 %476
    %v478 = vrcp.pop 256.0
    %v479 = vmul.f32 256.0, %v478
    %v480 = vsub.f32 1.0, %v479
    %v481 = vmul.f32 %v478, %v480
    %v482 = vadd.f32 %v478, %v481
    %vm483 = vweird.f32 %v478
    %v484 = vsel %vm483, %v478, %v482
    %v485 = vmul.f32 %v474, %v484
    %v486 = vmul.f32 %v477, %v484
    %v487 = vmul.f32 %v468, %v468
    %v488 = vmul.f32 %v469, %v469
    %v489 = vmul.f32 %v470, %v470
    %v490 = vmul.f32 %v471, %v471
    %v491 = vadd.f32 %v487, %v488
    %492 = vadd.xlane.f32.xlu0 %v491
    %v493 = vpop.xlane.xlu0 %492
    %v494 = vadd.f32 %v489, %v490
    %495 = vadd.xlane.f32.xlu0 %v494
    %v496 = vpop.xlane.xlu0 %495
    %v497 = vmul.f32 %v493, %v484
    %v498 = vmul.f32 %v496, %v484
    %v499 = vmul.f32 %v485, %v485
    %v500 = vmul.f32 %v486, %v486
    %v501 = vsub.f32 %v497, %v499
    %v502 = vsub.f32 %v498, %v500
    %v503 = vmax.f32 %v501, 0.0
    %v504 = vmax.f32 %v502, 0.0
    %v505 = vsub.f32 %v468, %v485
    %v506 = vsub.f32 %v469, %v485
    %v507 = vsub.f32 %v470, %v486
    %v508 = vsub.f32 %v471, %v486
    %v509 = vadd.f32 %v503, 1e-05
    %v510 = vadd.f32 %v504, 1e-05
    %v511 = vrsqrt.pop %v509
    %v512 = vmul.f32 %v511, %v509
    %v513 = vmul.f32 %v512, %v511
    %v514 = vmul.f32 0.5, %v513
    %v515 = vsub.f32 1.5, %v514
    %v516 = vmul.f32 %v511, %v515
    %vm517 = vweird.f32 %v509
    %vm518 = vweird.f32 %v511
    %vm519 = vmor %vm517, %vm518
    %v520 = vsel %vm519, %v511, %v516
    %v521 = vrsqrt.pop %v510
    %v522 = vmul.f32 %v521, %v510
    %v523 = vmul.f32 %v522, %v521
    %v524 = vmul.f32 0.5, %v523
    %v525 = vsub.f32 1.5, %v524
    %v526 = vmul.f32 %v521, %v525
    %vm527 = vweird.f32 %v510
    %vm528 = vweird.f32 %v521
    %vm529 = vmor %vm527, %vm528
    %v530 = vsel %vm529, %v521, %v526
    %v531 = vmul.f32 %v505, %v520
    %v532 = vmul.f32 %v506, %v520
    %v533 = vmul.f32 %v507, %v530
    %v534 = vmul.f32 %v508, %v530
    %v536 = vperm.slane %v100, 0
    %v537 = vperm.slane %v100, 1
    %v540 = vmul.f32 %v531, %v536
    %v541 = vmul.f32 %v532, %v537
    %v542 = vmul.f32 %v533, %v536
    %v543 = vmul.f32 %v534, %v537
    %v545 = vperm.slane %v102, 0
    %v546 = vperm.slane %v102, 1
    %v549 = vadd.f32 %v540, %v545
    %v550 = vadd.f32 %v541, %v546
    %v551 = vadd.f32 %v542, %v545
    %v552 = vadd.f32 %v543, %v546
    %v553 = vpack.c.bf16 %v550, %v549
    %v554 = vpack.c.bf16 %v552, %v551
    %555 = vst [vmem:[#allocation11] sm:$0xff] %v553
    %556 = vst [vmem:[#allocation11 + $0x8] sm:$0xff] %v554
    // Predicated region
    $region42: #{tpu_custom_call.1} parent=1 // pred_check
      _
    $region43: #{tpu_custom_call.1} parent=1 // pred_check_branch
      %558 = sbr.rel (0) target = $region45
    $region44: #{tpu_custom_call.1} parent=1 // pred_region
      %560 = vsyncadd [#allocation4], 0
      %s561 = sshll.u32 [#allocation11], 4
      %s562 = int_to_ptr.vmem [resolvable:$true] %s561
      %s563 = sshll.u32 %s5, 4
      %s564 = int_to_ptr.hbm [resolvable:$true] %s563
      %569 = dma.vmem_to_hbm [thread:$0]  %s562, 256, %s564, [#allocation4], 128, 128, 8
    $region45: #{tpu_custom_call.1} parent=1 // pred_fallthru
      _
    // Predicated region
    $region46: #{tpu_custom_call.1} parent=1 // pred_check
      _
    $region47: #{tpu_custom_call.1} parent=1 // pred_check_branch
      %571 = sbr.rel (0) target = $region49
    $region48: #{tpu_custom_call.1} parent=1 // pred_region
      %573 = dma.done [#allocation4], 256
    $region49: #{tpu_custom_call.1} parent=1 // pred_fallthru
      _
    %574 = vsyncpa [#allocation3], 1
    %575 = vsyncpa [#allocation6], 1
    %576 = vsyncpa [#allocation9], 1
    %577 = vsyncpa [#allocation4], 1

// kernel: tpu_custom_call.1
$region0: #{tpu_custom_call.1}
  #allocation0 [shape = 'u32[]', space=smem, size = 0x4, offset = 0x4, fixed_abs, tag = 'smem constant byte address 0x4 - core index']
  #allocation1 [shape = 'u32[72,128]{1,0:T(1,128)}', space=vmem, size = 0x9000, scoped, tag = 'internal scratch']
  %s0 = inlined_call_operand.hbm [shape: f32[16,128], index: 0, kind: input, shape index: {}]
  %s1 = inlined_call_operand.hbm [shape: f32[3,128], index: 1, kind: input, shape index: {}]
  %s2 = inlined_call_operand.hbm [shape: bf16[128,128], index: 2, kind: input, shape index: {}]
  %s3 = inlined_call_operand.hbm [shape: bf16[128,256], index: 3, kind: input, shape index: {}]
  %s4 = inlined_call_operand.hbm [shape: f32[3,256], index: 4, kind: input, shape index: {}]
  %s5 = inlined_call_operand.hbm [shape: bf16[16,256], index: 5, kind: output, shape index: {}]
  %s6 = sld [smem:[#allocation0]]
  $region50: #{tpu_custom_call.1} parent=0
    _
  %s8 = ssub.s32 1, %s6
  %s9 = scalar_select 0, %s8, %s6
  $region1: #{tpu_custom_call.1} parent=0
    #allocation2 [shape = 'u8[8192]{0}', space=vmem, size = 0x2000, scoped, tag = 'input window, operand 0, single buffered']
    #allocation3 [shape = 's32[1]{0}', space=sflag, size = 0x4, scoped, tag = 'scoped memory for tpu_custom_call.1']
    #allocation4 [shape = 's32[1]{0}', space=sflag, size = 0x4, scoped, tag = 'scoped memory for tpu_custom_call.1']
    #allocation5 [shape = 'u8[2048]{0}', space=vmem, size = 0x800, scoped, tag = 'input window, operand 1, single buffered']
    #allocation6 [shape = 's32[1]{0}', space=sflag, size = 0x4, scoped, tag = 'scoped memory for tpu_custom_call.1']
    #allocation7 [shape = 'u8[32768]{0}', space=vmem, size = 0x8000, scoped, tag = 'input window, operand 2, single buffered']
    #allocation8 [shape = 'u8[65536]{0}', space=vmem, size = 0x10000, scoped, tag = 'input window, operand 3, single buffered']
    #allocation9 [shape = 's32[1]{0}', space=sflag, size = 0x4, scoped, tag = 'scoped memory for tpu_custom_call.1']
    #allocation10 [shape = 'u8[4096]{0}', space=vmem, size = 0x1000, scoped, tag = 'input window, operand 4, single buffered']
    #allocation11 [shape = 'u8[8192]{0}', space=vmem, size = 0x2000, scoped, tag = 'output window, operand 0, single buffered']
    %10 = vsyncpa [#allocation3], 0
    %11 = vsyncpa [#allocation6], 0
    %12 = vsyncpa [#allocation9], 0
    %13 = vsyncpa [#allocation4], 0
    // Predicated region
    $region2: #{tpu_custom_call.1} parent=1 // pred_check
      _
    $region3: #{tpu_custom_call.1} parent=1 // pred_check_branch
      %15 = sbr.rel (0) target = $region5
    $region4: #{tpu_custom_call.1} parent=1 // pred_region
      %17 = vsyncadd [#allocation3], 0
      %s18 = sshll.u32 %s0, 4
      %s19 = int_to_ptr.hbm [resolvable:$true] %s18
      %s20 = sshll.u32 [#allocation2], 4
      %s21 = int_to_ptr.vmem [resolvable:$true] %s20
      %26 = dma.hbm_to_vmem [thread:$0]  %s19, 256, %s21, [#allocation3], 128, 128, 8
    $region5: #{tpu_custom_call.1} parent=1 // pred_fallthru
      _
    // Predicated region
    $region6: #{tpu_custom_call.1} parent=1 // pred_check
      _
    $region7: #{tpu_custom_call.1} parent=1 // pred_check_branch
      %28 = sbr.rel (0) target = $region9
    $region8: #{tpu_custom_call.1} parent=1 // pred_region
      %30 = vsyncadd [#allocation6], 0
      %s32 = sshll.u32 %s1, 4
      %s33 = int_to_ptr.hbm [resolvable:$true] %s32
      %s34 = sshll.u32 [#allocation5], 4
      %s35 = int_to_ptr.vmem [resolvable:$true] %s34
      %37 = dma.hbm_to_vmem [thread:$0]  %s33, 64, %s35, [#allocation6]
    $region9: #{tpu_custom_call.1} parent=1 // pred_fallthru
      _
    // Predicated region
    $region10: #{tpu_custom_call.1} parent=1 // pred_check
      _
    $region11: #{tpu_custom_call.1} parent=1 // pred_check_branch
      %39 = sbr.rel (0) target = $region13
    $region12: #{tpu_custom_call.1} parent=1 // pred_region
      %41 = vsyncadd [#allocation6], 0
      %s42 = sshll.u32 %s2, 4
      %s43 = int_to_ptr.hbm [resolvable:$true] %s42
      %s44 = sshll.u32 [#allocation7], 4
      %s45 = int_to_ptr.vmem [resolvable:$true] %s44
      %50 = dma.hbm_to_vmem [thread:$0]  %s43, 1024, %s45, [#allocation6], 64, 64, 4
    $region13: #{tpu_custom_call.1} parent=1 // pred_fallthru
      _
    // Predicated region
    $region14: #{tpu_custom_call.1} parent=1 // pred_check
      _
    $region15: #{tpu_custom_call.1} parent=1 // pred_check_branch
      %52 = sbr.rel (0) target = $region17
    $region16: #{tpu_custom_call.1} parent=1 // pred_region
      %54 = vsyncadd [#allocation9], 0
      %s55 = sshll.u32 %s3, 4
      %s56 = int_to_ptr.hbm [resolvable:$true] %s55
      %s57 = sshll.u32 [#allocation8], 4
      %s58 = int_to_ptr.vmem [resolvable:$true] %s57
      %63 = dma.hbm_to_vmem [thread:$0]  %s56, 2048, %s58, [#allocation9], 128, 128, 8
    $region17: #{tpu_custom_call.1} parent=1 // pred_fallthru
      _
    // Predicated region
    $region18: #{tpu_custom_call.1} parent=1 // pred_check
      _
    $region19: #{tpu_custom_call.1} parent=1 // pred_check_branch
      %65 = sbr.rel (0) target = $region21
    $region20: #{tpu_custom_call.1} parent=1 // pred_region
      %67 = vsyncadd [#allocation9], 0
      %s69 = sshll.u32 %s4, 4
      %s70 = int_to_ptr.hbm [resolvable:$true] %s69
      %s71 = sshll.u32 [#allocation10], 4
      %s72 = int_to_ptr.vmem [resolvable:$true] %s71
      %74 = dma.hbm_to_vmem [thread:$0]  %s70, 128, %s72, [#allocation9]
    $region21: #{tpu_custom_call.1} parent=1 // pred_fallthru
      _
    // Predicated region
    $region22: #{tpu_custom_call.1} parent=1 // pred_check
      _
    $region23: #{tpu_custom_call.1} parent=1 // pred_check_branch
      %76 = sbr.rel (0) target = $region25
    $region24: #{tpu_custom_call.1} parent=1 // pred_region
      %78 = dma.done [#allocation3], 256
    $region25: #{tpu_custom_call.1} parent=1 // pred_fallthru
      _
    // Predicated region
    $region26: #{tpu_custom_call.1} parent=1 // pred_check
      _
    $region27: #{tpu_custom_call.1} parent=1 // pred_check_branch
      %80 = sbr.rel (0) target = $region29
    $region28: #{tpu_custom_call.1} parent=1 // pred_region
      %82 = dma.done [#allocation6], 64
    $region29: #{tpu_custom_call.1} parent=1 // pred_fallthru
      _
    // Predicated region
    $region30: #{tpu_custom_call.1} parent=1 // pred_check
      _
    $region31: #{tpu_custom_call.1} parent=1 // pred_check_branch
      %84 = sbr.rel (0) target = $region33
    $region32: #{tpu_custom_call.1} parent=1 // pred_region
      %86 = dma.done [#allocation6], 1024
    $region33: #{tpu_custom_call.1} parent=1 // pred_fallthru
      _
    // Predicated region
    $region34: #{tpu_custom_call.1} parent=1 // pred_check
      _
    $region35: #{tpu_custom_call.1} parent=1 // pred_check_branch
      %88 = sbr.rel (0) target = $region37
    $region36: #{tpu_custom_call.1} parent=1 // pred_region
      %90 = dma.done [#allocation9], 2048
    $region37: #{tpu_custom_call.1} parent=1 // pred_fallthru
      _
    // Predicated region
    $region38: #{tpu_custom_call.1} parent=1 // pred_check
      _
    $region39: #{tpu_custom_call.1} parent=1 // pred_check_branch
      %92 = sbr.rel (0) target = $region41
    $region40: #{tpu_custom_call.1} parent=1 // pred_region
      %94 = dma.done [#allocation9], 128
    $region41: #{tpu_custom_call.1} parent=1 // pred_fallthru
      _
    %v95 = vld [vmem:[#allocation5] sm:$0x1]
    %v96 = vld [vmem:[#allocation5 + $0x1] sm:$0x1]
    %v97 = vld [vmem:[#allocation5 + $0x2] sm:$0x1]
    %v98 = vld [vmem:[#allocation10] ss:$4 sm:$0x3]
    %s99 = scalar_lea.vmem [#allocation10], 1
    %v100 = vld [vmem:[%s99] ss:$4 sm:$0x3]
    %s101 = scalar_lea.vmem [#allocation10], 2
    %v102 = vld [vmem:[%s101] ss:$4 sm:$0x3]
    %v103 = vld [vmem:[#allocation2] sm:$0xff]
    %v104 = vld [vmem:[#allocation2 + $0x8] sm:$0xff]
    %105 = vadd.xlane.f32.xlu0 %v103
    %v106 = vpop.xlane.xlu0 %105
    %107 = vadd.xlane.f32.xlu0 %v104
    %v108 = vpop.xlane.xlu0 %107
    %v109 = vrcp.pop 128.0
    %v110 = vmul.f32 128.0, %v109
    %v111 = vsub.f32 1.0, %v110
    %v112 = vmul.f32 %v109, %v111
    %v113 = vadd.f32 %v109, %v112
    %vm114 = vweird.f32 %v109
    %v115 = vsel %vm114, %v109, %v113
    %v116 = vmul.f32 %v106, %v115
    %v117 = vmul.f32 %v108, %v115
    %v118 = vmul.f32 %v103, %v103
    %v119 = vmul.f32 %v104, %v104
    %120 = vadd.xlane.f32.xlu0 %v118
    %v121 = vpop.xlane.xlu0 %120
    %122 = vadd.xlane.f32.xlu0 %v119
    %v123 = vpop.xlane.xlu0 %122
    %v124 = vmul.f32 %v121, %v115
    %v125 = vmul.f32 %v123, %v115
    %v126 = vmul.f32 %v116, %v116
    %v127 = vmul.f32 %v117, %v117
    %v128 = vsub.f32 %v124, %v126
    %v129 = vsub.f32 %v125, %v127
    %v130 = vmax.f32 %v128, 0.0
    %v131 = vmax.f32 %v129, 0.0
    %v132 = vsub.f32 %v103, %v116
    %v133 = vsub.f32 %v104, %v117
    %v134 = vadd.f32 %v130, 1e-05
    %v135 = vadd.f32 %v131, 1e-05
    %v136 = vrsqrt.pop %v134
    %v137 = vmul.f32 %v136, %v134
    %v138 = vmul.f32 %v137, %v136
    %v139 = vmul.f32 0.5, %v138
    %v140 = vsub.f32 1.5, %v139
    %v141 = vmul.f32 %v136, %v140
    %vm142 = vweird.f32 %v134
    %vm143 = vweird.f32 %v136
    %vm144 = vmor %vm142, %vm143
    %v145 = vsel %vm144, %v136, %v141
    %v146 = vrsqrt.pop %v135
    %v147 = vmul.f32 %v146, %v135
    %v148 = vmul.f32 %v147, %v146
    %v149 = vmul.f32 0.5, %v148
    %v150 = vsub.f32 1.5, %v149
    %v151 = vmul.f32 %v146, %v150
    %vm152 = vweird.f32 %v135
    %vm153 = vweird.f32 %v146
    %vm154 = vmor %vm152, %vm153
    %v155 = vsel %vm154, %v146, %v151
    %v156 = vmul.f32 %v132, %v145
    %v157 = vmul.f32 %v133, %v155
    %v158 = vperm.slane %v95, 0
    %v159 = vmul.f32 %v156, %v158
    %v160 = vmul.f32 %v157, %v158
    %v161 = vperm.slane %v96, 0
    %v162 = vadd.f32 %v159, %v161
    %v163 = vadd.f32 %v160, %v161
    %v164 = vpack.c.bf16 %v163, %v162
    %v165 = vld [vmem:[#allocation7] sm:$0xf]
    %v166 = vld [vmem:[#allocation7 + $0x4] sm:$0xf]
    %v167 = vld [vmem:[#allocation7 + $0x8] sm:$0xf]
    %v168 = vld [vmem:[#allocation7 + $0xc] sm:$0xf]
    %v169 = vld [vmem:[#allocation7 + $0x10] sm:$0xf]
    %v170 = vld [vmem:[#allocation7 + $0x14] sm:$0xf]
    %v171 = vld [vmem:[#allocation7 + $0x18] sm:$0xf]
    %v172 = vld [vmem:[#allocation7 + $0x1c] sm:$0xf]
    %v173 = vld [vmem:[#allocation7 + $0x20] sm:$0xf]
    %v174 = vld [vmem:[#allocation7 + $0x24] sm:$0xf]
    %v175 = vld [vmem:[#allocation7 + $0x28] sm:$0xf]
    %v176 = vld [vmem:[#allocation7 + $0x2c] sm:$0xf]
    %v177 = vld [vmem:[#allocation7 + $0x30] sm:$0xf]
    %v178 = vld [vmem:[#allocation7 + $0x34] sm:$0xf]
    %v179 = vld [vmem:[#allocation7 + $0x38] sm:$0xf]
    %v180 = vld [vmem:[#allocation7 + $0x3c] sm:$0xf]
    %v181 = vperm.slane %v97, 0
    %v198 = vunpack.c.l.b16 %v165
    %v199 = vunpack.c.l.b16 %v166
    %v200 = vunpack.c.l.b16 %v167
    %v201 = vunpack.c.l.b16 %v168
    %v202 = vunpack.c.l.b16 %v169
    %v203 = vunpack.c.l.b16 %v170
    %v204 = vunpack.c.l.b16 %v171
    %v205 = vunpack.c.l.b16 %v172
    %v206 = vunpack.c.l.b16 %v173
    %v207 = vunpack.c.l.b16 %v174
    %v208 = vunpack.c.l.b16 %v175
    %v209 = vunpack.c.l.b16 %v176
    %v210 = vunpack.c.l.b16 %v177
    %v211 = vunpack.c.l.b16 %v178
    %v212 = vunpack.c.l.b16 %v179
    %v213 = vunpack.c.l.b16 %v180
    %v214 = vpack.c.b16 %v199, %v198
    %v215 = vpack.c.b16 %v201, %v200
    %v216 = vpack.c.b16 %v203, %v202
    %v217 = vpack.c.b16 %v205, %v204
    %v218 = vpack.c.b16 %v207, %v206
    %v219 = vpack.c.b16 %v209, %v208
    %v220 = vpack.c.b16 %v211, %v210
    %v221 = vpack.c.b16 %v213, %v212
    %230 = vmatpush.bf16.msra.mxu0 %v221
    %231 = vmatpush.bf16.msra.mxu0 %v220
    %232 = vmatpush.bf16.msra.mxu0 %v219
    %233 = vmatpush.bf16.msra.mxu0 %v218
    %234 = vmatpush.bf16.msra.mxu0 %v217
    %235 = vmatpush.bf16.msra.mxu0 %v216
    %236 = vmatpush.bf16.msra.mxu0 %v215
    %237 = vmatpush.bf16.msra.mxu0 %v214
    %238 = vmatmul.bf16.gmra.mxu0 %v164
    %v239 = vpop.f32.mrf.mxu0
    %v240 = vadd.f32 %v181, %v239
    %v241 = vpop.f32.mrf.mxu0
    %v242 = vadd.f32 %v181, %v241
    %243 = vdwg.mxu0
    %v244 = vpack.c.bf16 %v240, %v240
    %v245 = vpack.c.bf16 %v242, %v242
    %v246 = vunpack.c.l.bf16 %v244
    %v247 = vunpack.c.l.bf16 %v245
    %v248 = vmul.f32 %v246, 0.5
    %v249 = vmul.f32 %v247, 0.5
    %v250 = vmul.f32 %v246, 0.70710677
    %v251 = vmul.f32 %v247, 0.70710677
    %v252 = vmul.f32 %v250, %v250
    %v253 = vmin.f32 16.0, %v252
    %v254 = vmul.f32 %v253, 2.1237322e-06
    %v255 = vadd.f32 %v254, 0.00028619796
    %v256 = vmul.f32 %v253, %v255
    %v257 = vadd.f32 %v256, 0.0036580483
    %v258 = vmul.f32 %v253, %v257
    %v259 = vadd.f32 %v258, 0.05243302
    %v260 = vmul.f32 %v253, %v259
    %v261 = vadd.f32 %v260, 0.18741608
    %v262 = vmul.f32 %v253, %v261
    %v263 = vadd.f32 %v262, 1.1283791
    %v264 = vmul.f32 %v250, %v263
    %v265 = vmul.f32 %v253, 3.8918573e-05
    %v266 = vadd.f32 %v265, 0.001143296
    %v267 = vmul.f32 %v253, %v266
    %v268 = vadd.f32 %v267, 0.014752088
    %v269 = vmul.f32 %v253, %v268
    %v270 = vadd.f32 %v269, 0.112945676
    %v271 = vmul.f32 %v253, %v270
    %v272 = vadd.f32 %v271, 0.4994258
    %v273 = vmul.f32 %v253, %v272
    %v274 = vadd.f32 %v273, 1.0
    %v275 = vrcp.pop %v274
    %v276 = vmul.f32 %v274, %v275
    %v277 = vsub.f32 1.0, %v276
    %v278 = vmul.f32 %v275, %v277
    %v279 = vadd.f32 %v275, %v278
    %vm280 = vweird.f32 %v274
    %vm281 = vweird.f32 %v275
    %vm282 = vmor %vm280, %vm281
    %v283 = vsel %vm282, %v275, %v279
    %v284 = vand.u32 2147483647, %v274
    %vm285 = vcmp.eq.f32.partialorder %v284, 8.507059e+37
    %v286 = vand.u32 %v274, 2147483648
    %v287 = vor.u32 1.1754944e-38, %v286
    %v288 = vsel %vm285, %v287, %v283
    %v289 = vmul.f32 %v264, %v288
    %v290 = vmin.f32 %v289, 1.0
    %v291 = vmax.f32 %v290, -1.0
    %v292 = vmul.f32 %v251, %v251
    %v293 = vmin.f32 16.0, %v292
    %v294 = vmul.f32 %v293, 2.1237322e-06
    %v295 = vadd.f32 %v294, 0.00028619796
    %v296 = vmul.f32 %v293, %v295
    %v297 = vadd.f32 %v296, 0.0036580483
    %v298 = vmul.f32 %v293, %v297
    %v299 = vadd.f32 %v298, 0.05243302
    %v300 = vmul.f32 %v293, %v299
    %v301 = vadd.f32 %v300, 0.18741608
    %v302 = vmul.f32 %v293, %v301
    %v303 = vadd.f32 %v302, 1.1283791
    %v304 = vmul.f32 %v251, %v303
    %v305 = vmul.f32 %v293, 3.8918573e-05
    %v306 = vadd.f32 %v305, 0.001143296
    %v307 = vmul.f32 %v293, %v306
    %v308 = vadd.f32 %v307, 0.014752088
    %v309 = vmul.f32 %v293, %v308
    %v310 = vadd.f32 %v309, 0.112945676
    %v311 = vmul.f32 %v293, %v310
    %v312 = vadd.f32 %v311, 0.4994258
    %v313 = vmul.f32 %v293, %v312
    %v314 = vadd.f32 %v313, 1.0
    %v315 = vrcp.pop %v314
    %v316 = vmul.f32 %v314, %v315
    %v317 = vsub.f32 1.0, %v316
    %v318 = vmul.f32 %v315, %v317
    %v319 = vadd.f32 %v315, %v318
    %vm320 = vweird.f32 %v314
    %vm321 = vweird.f32 %v315
    %vm322 = vmor %vm320, %vm321
    %v323 = vsel %vm322, %v315, %v319
    %v324 = vand.u32 2147483647, %v314
    %vm325 = vcmp.eq.f32.partialorder %v324, 8.507059e+37
    %v326 = vand.u32 %v314, 2147483648
    %v327 = vor.u32 1.1754944e-38, %v326
    %v328 = vsel %vm325, %v327, %v323
    %v329 = vmul.f32 %v304, %v328
    %v330 = vmin.f32 %v329, 1.0
    %v331 = vmax.f32 %v330, -1.0
    %v332 = vadd.f32 %v291, 1.0
    %v333 = vadd.f32 %v331, 1.0
    %v334 = vmul.f32 %v248, %v332
    %v335 = vmul.f32 %v249, %v333
    %v336 = vpack.c.bf16 %v335, %v334
    %v337 = vld [vmem:[#allocation8] sm:$0xff]
    %v338 = vld [vmem:[#allocation8 + $0x8] sm:$0xff]
    %v339 = vld [vmem:[#allocation8 + $0x10] sm:$0xff]
    %v340 = vld [vmem:[#allocation8 + $0x18] sm:$0xff]
    %v341 = vld [vmem:[#allocation8 + $0x20] sm:$0xff]
    %v342 = vld [vmem:[#allocation8 + $0x28] sm:$0xff]
    %v343 = vld [vmem:[#allocation8 + $0x30] sm:$0xff]
    %v344 = vld [vmem:[#allocation8 + $0x38] sm:$0xff]
    %v345 = vld [vmem:[#allocation8 + $0x40] sm:$0xff]
    %v346 = vld [vmem:[#allocation8 + $0x48] sm:$0xff]
    %v347 = vld [vmem:[#allocation8 + $0x50] sm:$0xff]
    %v348 = vld [vmem:[#allocation8 + $0x58] sm:$0xff]
    %v349 = vld [vmem:[#allocation8 + $0x60] sm:$0xff]
    %v350 = vld [vmem:[#allocation8 + $0x68] sm:$0xff]
    %v351 = vld [vmem:[#allocation8 + $0x70] sm:$0xff]
    %v352 = vld [vmem:[#allocation8 + $0x78] sm:$0xff]
    %v354 = vperm.slane %v98, 0
    %v355 = vperm.slane %v98, 1
    %v374 = vunpack.c.l.b16 %v337
    %v375 = vunpack.c.h.b16 %v337
    %v376 = vunpack.c.l.b16 %v338
    %v377 = vunpack.c.h.b16 %v338
    %v378 = vunpack.c.l.b16 %v339
    %v379 = vunpack.c.h.b16 %v339
    %v380 = vunpack.c.l.b16 %v340
    %v381 = vunpack.c.h.b16 %v340
    %v382 = vunpack.c.l.b16 %v341
    %v383 = vunpack.c.h.b16 %v341
    %v384 = vunpack.c.l.b16 %v342
    %v385 = vunpack.c.h.b16 %v342
    %v386 = vunpack.c.l.b16 %v343
    %v387 = vunpack.c.h.b16 %v343
    %v388 = vunpack.c.l.b16 %v344
    %v389 = vunpack.c.h.b16 %v344
    %v390 = vunpack.c.l.b16 %v345
    %v391 = vunpack.c.h.b16 %v345
    %v392 = vunpack.c.l.b16 %v346
    %v393 = vunpack.c.h.b16 %v346
    %v394 = vunpack.c.l.b16 %v347
    %v395 = vunpack.c.h.b16 %v347
    %v396 = vunpack.c.l.b16 %v348
    %v397 = vunpack.c.h.b16 %v348
    %v398 = vunpack.c.l.b16 %v349
    %v399 = vunpack.c.h.b16 %v349
    %v400 = vunpack.c.l.b16 %v350
    %v401 = vunpack.c.h.b16 %v350
    %v402 = vunpack.c.l.b16 %v351
    %v403 = vunpack.c.h.b16 %v351
    %v404 = vunpack.c.l.b16 %v352
    %v405 = vunpack.c.h.b16 %v352
    %v406 = vpack.c.b16 %v376, %v374
    %v407 = vpack.c.b16 %v377, %v375
    %v408 = vpack.c.b16 %v380, %v378
    %v409 = vpack.c.b16 %v381, %v379
    %v410 = vpack.c.b16 %v384, %v382
    %v411 = vpack.c.b16 %v385, %v383
    %v412 = vpack.c.b16 %v388, %v386
    %v413 = vpack.c.b16 %v389, %v387
    %v414 = vpack.c.b16 %v392, %v390
    %v415 = vpack.c.b16 %v393, %v391
    %v416 = vpack.c.b16 %v396, %v394
    %v417 = vpack.c.b16 %v397, %v395
    %v418 = vpack.c.b16 %v400, %v398
    %v419 = vpack.c.b16 %v401, %v399
    %v420 = vpack.c.b16 %v404, %v402
    %v421 = vpack.c.b16 %v405, %v403
    %438 = vmatpush.bf16.msra.mxu0 %v420
    %439 = vmatpush.bf16.msra.mxu0 %v418
    %440 = vmatpush.bf16.msra.mxu0 %v416
    %441 = vmatpush.bf16.msra.mxu0 %v414
    %442 = vmatpush.bf16.msra.mxu0 %v412
    %443 = vmatpush.bf16.msra.mxu0 %v410
    %444 = vmatpush.bf16.msra.mxu0 %v408
    %445 = vmatpush.bf16.msra.mxu0 %v406
    %446 = vmatmul.bf16.gmra.mxu0 %v336
    %v447 = vpop.f32.mrf.mxu0
    %v448 = vadd.f32 %v354, %v447
    %v449 = vpop.f32.mrf.mxu0
    %v450 = vadd.f32 %v354, %v449
    %451 = vdwg.mxu0
    %452 = vmatpush.bf16.msra.mxu0 %v421
    %453 = vmatpush.bf16.msra.mxu0 %v419
    %454 = vmatpush.bf16.msra.mxu0 %v417
    %455 = vmatpush.bf16.msra.mxu0 %v415
    %456 = vmatpush.bf16.msra.mxu0 %v413
    %457 = vmatpush.bf16.msra.mxu0 %v411
    %458 = vmatpush.bf16.msra.mxu0 %v409
    %459 = vmatpush.bf16.msra.mxu0 %v407
    %460 = vmatmul.bf16.gmra.mxu0 %v336
    %v461 = vpop.f32.mrf.mxu0
    %v462 = vadd.f32 %v355, %v461
    %v463 = vpop.f32.mrf.mxu0
    %v464 = vadd.f32 %v355, %v463
    %465 = vdwg.mxu0
    %v466 = vpack.c.bf16 %v462, %v448
    %v467 = vpack.c.bf16 %v464, %v450
    %v468 = vunpack.c.l.bf16 %v466
    %v469 = vunpack.c.h.bf16 %v466
    %v470 = vunpack.c.l.bf16 %v467
    %v471 = vunpack.c.h.bf16 %v467
    %v472 = vadd.f32 %v468, %v469
    %473 = vadd.xlane.f32.xlu0 %v472
    %v474 = vpop.xlane.xlu0 %473
    %v475 = vadd.f32 %v470, %v471
    %476 = vadd.xlane.f32.xlu0 %v475
    %v477 = vpop.xlane.xlu0 %476
    %v478 = vrcp.pop 256.0
    %v479 = vmul.f32 256.0, %v478
    %v480 = vsub.f32 1.0, %v479
    %v481 = vmul.f32 %v478, %v480
    %v482 = vadd.f32 %v478, %v481
    %vm483 = vweird.f32 %v478
    %v484 = vsel %vm483, %v478, %v482
    %v485 = vmul.f32 %v474, %v484
    %v486 = vmul.f32 %v477, %v484
    %v487 = vmul.f32 %v468, %v468
    %v488 = vmul.f32 %v469, %v469
    %v489 = vmul.f32 %v470, %v470
    %v490 = vmul.f32 %v471, %v471
    %v491 = vadd.f32 %v487, %v488
    %492 = vadd.xlane.f32.xlu0 %v491
    %v493 = vpop.xlane.xlu0 %492
    %v494 = vadd.f32 %v489, %v490
    %495 = vadd.xlane.f32.xlu0 %v494
    %v496 = vpop.xlane.xlu0 %495
    %v497 = vmul.f32 %v493, %v484
    %v498 = vmul.f32 %v496, %v484
    %v499 = vmul.f32 %v485, %v485
    %v500 = vmul.f32 %v486, %v486
    %v501 = vsub.f32 %v497, %v499
    %v502 = vsub.f32 %v498, %v500
    %v503 = vmax.f32 %v501, 0.0
    %v504 = vmax.f32 %v502, 0.0
    %v505 = vsub.f32 %v468, %v485
    %v506 = vsub.f32 %v469, %v485
    %v507 = vsub.f32 %v470, %v486
    %v508 = vsub.f32 %v471, %v486
    %v509 = vadd.f32 %v503, 1e-05
    %v510 = vadd.f32 %v504, 1e-05
    %v511 = vrsqrt.pop %v509
    %v512 = vmul.f32 %v511, %v509
    %v513 = vmul.f32 %v512, %v511
    %v514 = vmul.f32 0.5, %v513
    %v515 = vsub.f32 1.5, %v514
    %v516 = vmul.f32 %v511, %v515
    %vm517 = vweird.f32 %v509
    %vm518 = vweird.f32 %v511
    %vm519 = vmor %vm517, %vm518
    %v520 = vsel %vm519, %v511, %v516
    %v521 = vrsqrt.pop %v510
    %v522 = vmul.f32 %v521, %v510
    %v523 = vmul.f32 %v522, %v521
    %v524 = vmul.f32 0.5, %v523
    %v525 = vsub.f32 1.5, %v524
    %v526 = vmul.f32 %v521, %v525
    %vm527 = vweird.f32 %v510
    %vm528 = vweird.f32 %v521
    %vm529 = vmor %vm527, %vm528
    %v530 = vsel %vm529, %v521, %v526
    %v531 = vmul.f32 %v505, %v520
    %v532 = vmul.f32 %v506, %v520
    %v533 = vmul.f32 %v507, %v530
    %v534 = vmul.f32 %v508, %v530
    %v536 = vperm.slane %v100, 0
    %v537 = vperm.slane %v100, 1
    %v540 = vmul.f32 %v531, %v536
    %v541 = vmul.f32 %v532, %v537
    %v542 = vmul.f32 %v533, %v536
    %v543 = vmul.f32 %v534, %v537
    %v545 = vperm.slane %v102, 0
    %v546 = vperm.slane %v102, 1
    %v549 = vadd.f32 %v540, %v545
    %v550 = vadd.f32 %v541, %v546
    %v551 = vadd.f32 %v542, %v545
    %v552 = vadd.f32 %v543, %v546
    %v553 = vpack.c.bf16 %v550, %v549
    %v554 = vpack.c.bf16 %v552, %v551
    %555 = vst [vmem:[#allocation11] sm:$0xff] %v553
    %556 = vst [vmem:[#allocation11 + $0x8] sm:$0xff] %v554
    // Predicated region
    $region42: #{tpu_custom_call.1} parent=1 // pred_check
      _
    $region43: #{tpu_custom_call.1} parent=1 // pred_check_branch
      %558 = sbr.rel (0) target = $region45
    $region44: #{tpu_custom_call.1} parent=1 // pred_region
      %560 = vsyncadd [#allocation4], 0
      %s561 = sshll.u32 [#allocation11], 4
      %s562 = int_to_ptr.vmem [resolvable:$true] %s561
      %s563 = sshll.u32 %s5, 4
      %s564 = int_to_ptr.hbm [resolvable:$true] %s563
      %569 = dma.vmem_to_hbm [thread:$0]  %s562, 256, %s564, [#allocation4], 128, 128, 8
    $region45: #{tpu_custom_call.1} parent=1 // pred_fallthru
      _
    // Predicated region
    $region46: #{tpu_custom_call.1} parent=1 // pred_check
      _
    $region47: #{tpu_custom_call.1} parent=1 // pred_check_branch
      %571 = sbr.rel (0) target = $region49
    $region48: #{tpu_custom_call.1} parent=1 // pred_region
      %573 = dma.done [#allocation4], 256
    $region49: #{tpu_custom_call.1} parent=1 // pred_fallthru
      _
    %574 = vsyncpa [#allocation3], 1
    %575 = vsyncpa [#allocation6], 1
    %576 = vsyncpa [#allocation9], 1
    %577 = vsyncpa [#allocation4], 1

</llo_original>
